<compile_context>
chip_gen: v7x
topology: tpu7x:2x2x1
jax: 0.10.0
libtpu: 0.0.40
codegen_flags: <defaults>
</compile_context>

<pallas_src>
import functools

import jax
import jax.numpy as jnp
from jax import lax
from jax.experimental import pallas as pl
from jax.experimental.pallas import tpu as pltpu


def _round_up(x, m):
    return -(-x // m) * m


# ----------------------------------------------------------------------------
# 1) QKV projection: (M, E) x (3H, E, Dh) -> (3H, M, Dh)   (scale pre-folded)
# ----------------------------------------------------------------------------
def _qkv_proj_kernel(x_ref, w_ref, o_ref):
    # x_ref: (T, E) bf16 (resident across the 3H axis), w_ref: (1, E, Dh) bf16
    o_ref[0] = jnp.dot(x_ref[...], w_ref[0],
                       preferred_element_type=jnp.float32).astype(o_ref.dtype)


def _qkv_projection(x2d, wqkv_p, *, tm):
    M, E = x2d.shape
    S, _, Dh = wqkv_p.shape                      # S = 3H
    grid = (M // tm, S)                          # s innermost -> x tile stays resident
    return pl.pallas_call(
        _qkv_proj_kernel,
        out_shape=jax.ShapeDtypeStruct((S, M, Dh), x2d.dtype),
        grid=grid,
        in_specs=[
            pl.BlockSpec((tm, E), lambda i, s: (i, 0)),
            pl.BlockSpec((1, E, Dh), lambda i, s: (s, 0, 0)),
        ],
        out_specs=pl.BlockSpec((1, tm, Dh), lambda i, s: (s, i, 0)),
        compiler_params=pltpu.CompilerParams(
            dimension_semantics=("parallel", "arbitrary")),
    )(x2d, wqkv_p)


# ----------------------------------------------------------------------------
# 2) Flash attention: grid (B, H, Nq, Nk), online softmax over kv tiles
# ----------------------------------------------------------------------------
def _flash_attn_kernel(q_ref, k_ref, v_ref, o_ref, m_sc, l_sc, acc_sc, *,
                       kv_tile, n_valid, n_padded):
    ki = pl.program_id(3)

    @pl.when(ki == 0)
    def _init():
        m_sc[...] = jnp.full_like(m_sc, -1e30)
        l_sc[...] = jnp.zeros_like(l_sc)
        acc_sc[...] = jnp.zeros_like(acc_sc)

    q = q_ref[0]                                 # (tq, Dh) bf16, pre-scaled via Wq
    k = k_ref[0]                                 # (tk, Dh) bf16
    v = v_ref[0]                                 # (tk, Dh) bf16

    # q @ k^T as a contraction (no explicit transpose), f32 accumulation.
    s = lax.dot_general(q, k, (((1,), (1,)), ((), ())),
                        preferred_element_type=jnp.float32)       # (tq, tk)

    if n_padded != n_valid:                      # static branch: only when N was padded
        col = ki * kv_tile + lax.broadcasted_iota(jnp.int32, s.shape, 1)
        s = jnp.where(col < n_valid, s, -1e30)

    m_prev = m_sc[...]
    m_new = jnp.maximum(m_prev, jnp.max(s, axis=-1, keepdims=True))
    alpha = jnp.exp(m_prev - m_new)
    p = jnp.exp(s - m_new)                                        # (tq, tk) f32
    l_sc[...] = alpha * l_sc[...] + jnp.sum(p, axis=-1, keepdims=True)
    acc_sc[...] = alpha * acc_sc[...] + jnp.dot(
        p.astype(v.dtype), v, preferred_element_type=jnp.float32)
    m_sc[...] = m_new

    @pl.when(ki == pl.num_programs(3) - 1)
    def _finalize():
        # Exact division (runs once per q tile, not per kv step).
        o_ref[0] = (acc_sc[...] / l_sc[...]).astype(o_ref.dtype)


def _flash_attention(qkv, *, batch, num_heads, n_padded, n_valid, tq, tk):
    S, M, Dh = qkv.shape                         # S = 3H
    H = num_heads
    nq = n_padded // tq
    nk = n_padded // tk
    grid = (batch, H, nq, nk)

    # Exact-width per-head tiles straight out of the packed (3H, M, Dh) buffer.
    q_spec = pl.BlockSpec((1, tq, Dh), lambda b, h, qi, ki: (h, b * nq + qi, 0))
    k_spec = pl.BlockSpec((1, tk, Dh), lambda b, h, qi, ki: (H + h, b * nk + ki, 0))
    v_spec = pl.BlockSpec((1, tk, Dh), lambda b, h, qi, ki: (2 * H + h, b * nk + ki, 0))
    o_spec = pl.BlockSpec((1, tq, Dh), lambda b, h, qi, ki: (h, b * nq + qi, 0))

    kernel = functools.partial(_flash_attn_kernel, kv_tile=tk,
                               n_valid=n_valid, n_padded=n_padded)
    return pl.pallas_call(
        kernel,
        out_shape=jax.ShapeDtypeStruct((H, M, Dh), qkv.dtype),
        grid=grid,
        in_specs=[q_spec, k_spec, v_spec],
        out_specs=o_spec,
        scratch_shapes=[
            pltpu.VMEM((tq, 1), jnp.float32),    # running max
            pltpu.VMEM((tq, 1), jnp.float32),    # running sum
            pltpu.VMEM((tq, Dh), jnp.float32),   # f32 output accumulator
        ],
        compiler_params=pltpu.CompilerParams(
            dimension_semantics=("parallel", "parallel", "parallel", "arbitrary")),
    )(qkv, qkv, qkv)


# ----------------------------------------------------------------------------
# 3) Output projection with fused head merge + bias: (H, M, Dh) -> (M, E)
# ----------------------------------------------------------------------------
def _out_proj_kernel(a_ref, w_ref, b_ref, o_ref, acc_ref):
    h = pl.program_id(1)

    @pl.when(h == 0)
    def _init():
        acc_ref[...] = jnp.zeros_like(acc_ref)

    acc_ref[...] += jnp.dot(a_ref[0], w_ref[0], preferred_element_type=jnp.float32)

    @pl.when(h == pl.num_programs(1) - 1)
    def _finalize():
        o_ref[...] = (acc_ref[...] + b_ref[...]).astype(o_ref.dtype)


def _out_projection(attn, wo_p, bias, out_dtype, *, tm):
    H, M, Dh = attn.shape
    E = wo_p.shape[2]
    grid = (M // tm, H)                          # head axis is the K-reduction
    return pl.pallas_call(
        _out_proj_kernel,
        out_shape=jax.ShapeDtypeStruct((M, E), out_dtype),
        grid=grid,
        in_specs=[
            pl.BlockSpec((1, tm, Dh), lambda i, h: (h, i, 0)),
            pl.BlockSpec((1, Dh, E), lambda i, h: (h, 0, 0)),
            pl.BlockSpec((1, E), lambda i, h: (0, 0)),
        ],
        out_specs=pl.BlockSpec((tm, E), lambda i, h: (i, 0)),
        scratch_shapes=[pltpu.VMEM((tm, E), jnp.float32)],
        compiler_params=pltpu.CompilerParams(
            dimension_semantics=("parallel", "arbitrary")),
    )(attn, wo_p, bias)


# ----------------------------------------------------------------------------
# MultiHeadAttention forward
# ----------------------------------------------------------------------------
def multi_head_attention(x, params, num_heads, *, mxu_dtype=jnp.bfloat16,
                         seq_tile=256):
    """x: (B, N, E). params: wqkv (3E, E), wo (E, E), bo (E,) in torch layout."""
    B, N, E = x.shape
    H = num_heads
    assert E % H == 0, "embed_dim must be divisible by num_heads"
    Dh = E // H
    scale = float(Dh) ** (-0.5)
    out_dtype = x.dtype

    # Seq tile: multiple of 8, at most seq_tile; N is padded up to a tile multiple
    # and padded keys are masked in-kernel (handles e.g. N = 197).
    T = min(seq_tile, _round_up(N, 8))
    T = max(8, (T // 8) * 8)
    Npad = _round_up(N, T)
    M = B * Npad

    xp = x if Npad == N else jnp.pad(x, ((0, 0), (0, Npad - N), (0, 0)))
    x2d = xp.reshape(M, E).astype(mxu_dtype)          # bf16 activations end-to-end

    # One-time weight prep (wrapper side, outside the hot kernels):
    #   wqkv (3E, E) -> (3H, E_in, Dh) with the softmax scale folded into the q slabs.
    w3 = params["wqkv"].reshape(3, H, Dh, E)
    w3 = w3.at[0].multiply(scale)
    wqkv_p = jnp.transpose(w3, (0, 1, 3, 2)).reshape(3 * H, E, Dh).astype(mxu_dtype)
    #   wo (E, E) -> (H, Dh, E): head merge folded into the output projection K axis.
    wo_p = params["wo"].T.reshape(H, Dh, E).astype(mxu_dtype)
    bo = params["bo"].reshape(1, E).astype(jnp.float32)

    qkv = _qkv_projection(x2d, wqkv_p, tm=T)                           # (3H, M, Dh) bf16
    attn = _flash_attention(qkv, batch=B, num_heads=H, n_padded=Npad,
                            n_valid=N, tq=T, tk=T)                     # (H, M, Dh) bf16
    out = _out_projection(attn, wo_p, bo, out_dtype, tm=T)             # (M, E) f32

    out = out.reshape(B, Npad, E)
    if Npad != N:
        out = out[:, :N, :]
    return out


# ----------------------------------------------------------------------------
# Pure-JAX reference (sanity check)
# ----------------------------------------------------------------------------
def _reference(x, params, num_heads):
    B, Np, E = x.shape
    H = num_heads
    Dh = E // H
    scale = float(Dh) ** (-0.5)
    qkv = x @ params["wqkv"].T
    qkv = qkv.reshape(B, Np, 3, H, Dh).transpose(2, 0, 3, 1, 4)
    q, k, v = qkv[0], qkv[1], qkv[2]
    s = jnp.einsum("bhqd,bhkd->bhqk", q, k) * scale
    p = jax.nn.softmax(s, axis=-1)
    o = jnp.einsum("bhqk,bhkd->bhqd", p, v)
    o = o.transpose(0, 2, 1, 3).reshape(B, Np, E)
    return o @ params["wo"].T + params["bo"]


# ----------------------------------------------------------------------------
# Main
# ----------------------------------------------------------------------------
if __name__ == "__main__":
    B, NP, E, H = 2, 8, 32, 4   # embed_dim=32, num_heads=4 -> head_dim=8

    key = jax.random.PRNGKey(0)
    kx, kqkv, kwo, kbo = jax.random.split(key, 4)

    x = jax.random.normal(kx, (B, NP, E), dtype=jnp.float32)
    params = {
        # PyTorch Linear weight layout: (out_features, in_features)
        "wqkv": jax.random.normal(kqkv, (3 * E, E), dtype=jnp.float32) * 0.05,
        "wo": jax.random.normal(kwo, (E, E), dtype=jnp.float32) * 0.05,
        "bo": jax.random.normal(kbo, (E,), dtype=jnp.float32) * 0.05,
    }

    fn = jax.jit(functools.partial(multi_head_attention, num_heads=H))
    out = jax.block_until_ready(fn(x, params))

    ref = _reference(x, params, H)
    assert out.shape == (B, NP, E)
    # bf16 MXU operands / bf16 inter-kernel activations -> bf16-level tolerance.
    max_err = float(jnp.max(jnp.abs(out - ref)))
    assert jnp.allclose(out, ref, atol=2e-2, rtol=2e-2), (
        f"mismatch vs reference (max err {max_err})")

    print("KERNEL_OK")
</pallas_src>

<mosaic_0001>
module attributes {stable_mosaic.version = 11 : i64} {
  func.func @_flash_attn_kernel(%arg0: i32, %arg1: i32, %arg2: i32, %arg3: i32, %arg4: memref<1x8x8xbf16, #tpu.memory_space<vmem>>, %arg5: memref<1x8x8xbf16, #tpu.memory_space<vmem>>, %arg6: memref<1x8x8xbf16, #tpu.memory_space<vmem>>, %arg7: memref<1x8x8xbf16, #tpu.memory_space<vmem>>, %arg8: memref<8x1xf32, #tpu.memory_space<vmem>>, %arg9: memref<8x1xf32, #tpu.memory_space<vmem>>, %arg10: memref<8x8xf32, #tpu.memory_space<vmem>>) attributes {dimension_semantics = [#tpu.dimension_semantics<parallel>, #tpu.dimension_semantics<parallel>, #tpu.dimension_semantics<parallel>, #tpu.dimension_semantics<arbitrary>], iteration_bounds = array<i64: 2, 4, 1, 1>, scalar_prefetch = 0 : i64, scratch_operands = 3 : i64, tpu.core_type = #tpu.core_type<tc>, window_params = [{transform_indices = @transform_0, window_bounds = array<i64: 1, 8, 8>}, {transform_indices = @transform_1, window_bounds = array<i64: 1, 8, 8>}, {transform_indices = @transform_2, window_bounds = array<i64: 1, 8, 8>}, {transform_indices = @transform_3, window_bounds = array<i64: 1, 8, 8>}]} {
    %c0_i32 = arith.constant 0 : i32
    %0 = arith.cmpi eq, %arg3, %c0_i32 : i32
    %1 = arith.extui %0 : i1 to i32
    %c0_i32_0 = arith.constant 0 : i32
    %2 = arith.cmpi ne, %1, %c0_i32_0 : i32
    scf.if %2 {
      %cst_26 = arith.constant -1.000000e+30 : f32
      %36 = vector.broadcast %cst_26 : f32 to vector<8x1xf32>
      %c0_27 = arith.constant 0 : index
      %c0_28 = arith.constant 0 : index
      %37 = vector.load %arg8[%c0_27, %c0_28] : memref<8x1xf32, #tpu.memory_space<vmem>>, vector<8x1xf32>
      tpu.vector_store %arg8[%c0_27, %c0_28], %36 {strides = array<i32>} : memref<8x1xf32, #tpu.memory_space<vmem>>, vector<8x1xf32>,
      %cst_29 = arith.constant 0.000000e+00 : f32
      %38 = vector.broadcast %cst_29 : f32 to vector<8x1xf32>
      %c0_30 = arith.constant 0 : index
      %c0_31 = arith.constant 0 : index
      %39 = vector.load %arg9[%c0_30, %c0_31] : memref<8x1xf32, #tpu.memory_space<vmem>>, vector<8x1xf32>
      tpu.vector_store %arg9[%c0_30, %c0_31], %38 {strides = array<i32>} : memref<8x1xf32, #tpu.memory_space<vmem>>, vector<8x1xf32>,
      %cst_32 = arith.constant 0.000000e+00 : f32
      %40 = vector.broadcast %cst_32 : f32 to vector<8x8xf32>
      %c0_33 = arith.constant 0 : index
      %c0_34 = arith.constant 0 : index
      %41 = vector.load %arg10[%c0_33, %c0_34] : memref<8x8xf32, #tpu.memory_space<vmem>>, vector<8x8xf32>
      tpu.vector_store %arg10[%c0_33, %c0_34], %40 {strides = array<i32>} : memref<8x8xf32, #tpu.memory_space<vmem>>, vector<8x8xf32>,
    } else {
    }
    %c0 = arith.constant 0 : index
    %c0_1 = arith.constant 0 : index
    %c0_2 = arith.constant 0 : index
    %3 = vector.load %arg4[%c0, %c0_1, %c0_2] : memref<1x8x8xbf16, #tpu.memory_space<vmem>>, vector<1x8x8xbf16>
    %4 = vector.shape_cast %3 : vector<1x8x8xbf16> to vector<8x8xbf16>
    %c0_3 = arith.constant 0 : index
    %c0_4 = arith.constant 0 : index
    %c0_5 = arith.constant 0 : index
    %5 = vector.load %arg5[%c0_3, %c0_4, %c0_5] : memref<1x8x8xbf16, #tpu.memory_space<vmem>>, vector<1x8x8xbf16>
    %6 = vector.shape_cast %5 : vector<1x8x8xbf16> to vector<8x8xbf16>
    %c0_6 = arith.constant 0 : index
    %c0_7 = arith.constant 0 : index
    %c0_8 = arith.constant 0 : index
    %7 = vector.load %arg6[%c0_6, %c0_7, %c0_8] : memref<1x8x8xbf16, #tpu.memory_space<vmem>>, vector<1x8x8xbf16>
    %8 = vector.shape_cast %7 : vector<1x8x8xbf16> to vector<8x8xbf16>
    %cst = arith.constant dense<0.000000e+00> : vector<8x8xf32>
    %9 = tpu.matmul %4, %6, %cst {dimension_numbers = #tpu.dot_dimension_numbers<[1], [1], [0], [0], [0, 0, 1, 0], [], []>} : vector<8x8xbf16>, vector<8x8xbf16>, vector<8x8xf32> -> vector<8x8xf32>
    %c0_9 = arith.constant 0 : index
    %c0_10 = arith.constant 0 : index
    %10 = vector.load %arg8[%c0_9, %c0_10] : memref<8x1xf32, #tpu.memory_space<vmem>>, vector<8x1xf32>
    %cst_11 = arith.constant dense<0xFF800000> : vector<8xf32>
    %11 = vector.multi_reduction <maximumf>, %9, %cst_11 [1] : vector<8x8xf32> to vector<8xf32>
    %12 = vector.shape_cast %11 : vector<8xf32> to vector<8x1xf32>
    %13 = arith.maximumf %10, %12 : vector<8x1xf32>
    %14 = arith.subf %10, %13 : vector<8x1xf32>
    %15 = math.exp %14 : vector<8x1xf32>
    %16 = vector.broadcast %13 : vector<8x1xf32> to vector<8x8xf32>
    %17 = arith.subf %9, %16 : vector<8x8xf32>
    %18 = math.exp %17 : vector<8x8xf32>
    %c0_12 = arith.constant 0 : index
    %c0_13 = arith.constant 0 : index
    %19 = vector.load %arg9[%c0_12, %c0_13] : memref<8x1xf32, #tpu.memory_space<vmem>>, vector<8x1xf32>
    %20 = arith.mulf %15, %19 : vector<8x1xf32>
    %cst_14 = arith.constant dense<0.000000e+00> : vector<8xf32>
    %21 = vector.multi_reduction <add>, %18, %cst_14 [1] : vector<8x8xf32> to vector<8xf32>
    %22 = vector.shape_cast %21 : vector<8xf32> to vector<8x1xf32>
    %23 = arith.addf %20, %22 : vector<8x1xf32>
    %c0_15 = arith.constant 0 : index
    %c0_16 = arith.constant 0 : index
    %24 = vector.load %arg9[%c0_15, %c0_16] : memref<8x1xf32, #tpu.memory_space<vmem>>, vector<8x1xf32>
    tpu.vector_store %arg9[%c0_15, %c0_16], %23 {strides = array<i32>} : memref<8x1xf32, #tpu.memory_space<vmem>>, vector<8x1xf32>,
    %c0_17 = arith.constant 0 : index
    %c0_18 = arith.constant 0 : index
    %25 = vector.load %arg10[%c0_17, %c0_18] : memref<8x8xf32, #tpu.memory_space<vmem>>, vector<8x8xf32>
    %26 = vector.broadcast %15 : vector<8x1xf32> to vector<8x8xf32>
    %27 = arith.mulf %26, %25 : vector<8x8xf32>
    %28 = arith.truncf %18 : vector<8x8xf32> to vector<8x8xbf16>
    %cst_19 = arith.constant dense<0.000000e+00> : vector<8x8xf32>
    %29 = tpu.matmul %28, %8, %cst_19 {dimension_numbers = #tpu.dot_dimension_numbers<[1], [0], [0], [1], [0, 0, 1, 1], [], []>} : vector<8x8xbf16>, vector<8x8xbf16>, vector<8x8xf32> -> vector<8x8xf32>
    %30 = arith.addf %27, %29 : vector<8x8xf32>
    %c0_20 = arith.constant 0 : index
    %c0_21 = arith.constant 0 : index
    %31 = vector.load %arg10[%c0_20, %c0_21] : memref<8x8xf32, #tpu.memory_space<vmem>>, vector<8x8xf32>
    tpu.vector_store %arg10[%c0_20, %c0_21], %30 {strides = array<i32>} : memref<8x8xf32, #tpu.memory_space<vmem>>, vector<8x8xf32>,
    %c0_22 = arith.constant 0 : index
    %c0_23 = arith.constant 0 : index
    %32 = vector.load %arg8[%c0_22, %c0_23] : memref<8x1xf32, #tpu.memory_space<vmem>>, vector<8x1xf32>
    tpu.vector_store %arg8[%c0_22, %c0_23], %13 {strides = array<i32>} : memref<8x1xf32, #tpu.memory_space<vmem>>, vector<8x1xf32>,
    %c0_i32_24 = arith.constant 0 : i32
    %33 = arith.cmpi eq, %arg3, %c0_i32_24 : i32
    %34 = arith.extui %33 : i1 to i32
    %c0_i32_25 = arith.constant 0 : i32
    %35 = arith.cmpi ne, %34, %c0_i32_25 : i32
    scf.if %35 {
      %c0_26 = arith.constant 0 : index
      %c0_27 = arith.constant 0 : index
      %36 = vector.load %arg10[%c0_26, %c0_27] : memref<8x8xf32, #tpu.memory_space<vmem>>, vector<8x8xf32>
      %c0_28 = arith.constant 0 : index
      %c0_29 = arith.constant 0 : index
      %37 = vector.load %arg9[%c0_28, %c0_29] : memref<8x1xf32, #tpu.memory_space<vmem>>, vector<8x1xf32>
      %38 = vector.broadcast %37 : vector<8x1xf32> to vector<8x8xf32>
      %39 = arith.divf %36, %38 : vector<8x8xf32>
      %40 = arith.truncf %39 : vector<8x8xf32> to vector<8x8xbf16>
      %c0_30 = arith.constant 0 : index
      %c0_31 = arith.constant 0 : index
      %c0_32 = arith.constant 0 : index
      %41 = vector.load %arg7[%c0_30, %c0_31, %c0_32] : memref<1x8x8xbf16, #tpu.memory_space<vmem>>, vector<1x8x8xbf16>
      %42 = vector.shape_cast %41 : vector<1x8x8xbf16> to vector<8x8xbf16>
      %43 = vector.shape_cast %40 : vector<8x8xbf16> to vector<1x8x8xbf16>
      tpu.vector_store %arg7[%c0_30, %c0_31, %c0_32], %43 {strides = array<i32>} : memref<1x8x8xbf16, #tpu.memory_space<vmem>>, vector<1x8x8xbf16>,
    } else {
    }
    return
  }
  func.func @transform_0(%arg0: i32, %arg1: i32, %arg2: i32, %arg3: i32) -> (i32, i32, i32) {
    %c1_i32 = arith.constant 1 : i32
    %0 = arith.muli %arg0, %c1_i32 : i32
    %1 = arith.addi %0, %arg2 : i32
    %c0_i32 = arith.constant 0 : i32
    %c0_i32_0 = arith.constant 0 : i32
    return %arg1, %1, %c0_i32 : i32, i32, i32
  }
  func.func @transform_1(%arg0: i32, %arg1: i32, %arg2: i32, %arg3: i32) -> (i32, i32, i32) {
    %c4_i32 = arith.constant 4 : i32
    %0 = arith.addi %c4_i32, %arg1 : i32
    %c1_i32 = arith.constant 1 : i32
    %1 = arith.muli %arg0, %c1_i32 : i32
    %2 = arith.addi %1, %arg3 : i32
    %c0_i32 = arith.constant 0 : i32
    %c0_i32_0 = arith.constant 0 : i32
    return %0, %2, %c0_i32 : i32, i32, i32
  }
  func.func @transform_2(%arg0: i32, %arg1: i32, %arg2: i32, %arg3: i32) -> (i32, i32, i32) {
    %c8_i32 = arith.constant 8 : i32
    %0 = arith.addi %c8_i32, %arg1 : i32
    %c1_i32 = arith.constant 1 : i32
    %1 = arith.muli %arg0, %c1_i32 : i32
    %2 = arith.addi %1, %arg3 : i32
    %c0_i32 = arith.constant 0 : i32
    %c0_i32_0 = arith.constant 0 : i32
    return %0, %2, %c0_i32 : i32, i32, i32
  }
  func.func @transform_3(%arg0: i32, %arg1: i32, %arg2: i32, %arg3: i32) -> (i32, i32, i32) {
    %c1_i32 = arith.constant 1 : i32
    %0 = arith.muli %arg0, %c1_i32 : i32
    %1 = arith.addi %0, %arg2 : i32
    %c0_i32 = arith.constant 0 : i32
    %c0_i32_0 = arith.constant 0 : i32
    return %arg1, %1, %c0_i32 : i32, i32, i32
  }
}

module attributes {stable_mosaic.version = 11 : i64} {
  func.func @_qkv_proj_kernel(%arg0: i32, %arg1: i32, %arg2: memref<8x32xbf16, #tpu.memory_space<vmem>>, %arg3: memref<1x32x8xbf16, #tpu.memory_space<vmem>>, %arg4: memref<1x8x8xbf16, #tpu.memory_space<vmem>>) attributes {dimension_semantics = [#tpu.dimension_semantics<parallel>, #tpu.dimension_semantics<arbitrary>], iteration_bounds = array<i64: 2, 12>, scalar_prefetch = 0 : i64, scratch_operands = 0 : i64, tpu.core_type = #tpu.core_type<tc>, window_params = [{transform_indices = @transform_0, window_bounds = array<i64: 8, 32>}, {transform_indices = @transform_1, window_bounds = array<i64: 1, 32, 8>}, {transform_indices = @transform_2, window_bounds = array<i64: 1, 8, 8>}]} {
    %c0 = arith.constant 0 : index
    %c0_0 = arith.constant 0 : index
    %0 = vector.load %arg2[%c0, %c0_0] : memref<8x32xbf16, #tpu.memory_space<vmem>>, vector<8x32xbf16>
    %c0_1 = arith.constant 0 : index
    %c0_2 = arith.constant 0 : index
    %c0_3 = arith.constant 0 : index
    %1 = vector.load %arg3[%c0_1, %c0_2, %c0_3] : memref<1x32x8xbf16, #tpu.memory_space<vmem>>, vector<1x32x8xbf16>
    %2 = vector.shape_cast %1 : vector<1x32x8xbf16> to vector<32x8xbf16>
    %cst = arith.constant dense<0.000000e+00> : vector<8x8xf32>
    %3 = tpu.matmul %0, %2, %cst {dimension_numbers = #tpu.dot_dimension_numbers<[1], [0], [0], [1], [0, 0, 1, 1], [], []>} : vector<8x32xbf16>, vector<32x8xbf16>, vector<8x8xf32> -> vector<8x8xf32>
    %4 = arith.truncf %3 : vector<8x8xf32> to vector<8x8xbf16>
    %c0_4 = arith.constant 0 : index
    %c0_5 = arith.constant 0 : index
    %c0_6 = arith.constant 0 : index
    %5 = vector.load %arg4[%c0_4, %c0_5, %c0_6] : memref<1x8x8xbf16, #tpu.memory_space<vmem>>, vector<1x8x8xbf16>
    %6 = vector.shape_cast %5 : vector<1x8x8xbf16> to vector<8x8xbf16>
    %7 = vector.shape_cast %4 : vector<8x8xbf16> to vector<1x8x8xbf16>
    tpu.vector_store %arg4[%c0_4, %c0_5, %c0_6], %7 {strides = array<i32>} : memref<1x8x8xbf16, #tpu.memory_space<vmem>>, vector<1x8x8xbf16>,
    return
  }
  func.func @transform_0(%arg0: i32, %arg1: i32) -> (i32, i32) {
    %c0_i32 = arith.constant 0 : i32
    %c0_i32_0 = arith.constant 0 : i32
    return %arg0, %c0_i32 : i32, i32
  }
  func.func @transform_1(%arg0: i32, %arg1: i32) -> (i32, i32, i32) {
    %c0_i32 = arith.constant 0 : i32
    %c0_i32_0 = arith.constant 0 : i32
    %c0_i32_1 = arith.constant 0 : i32
    return %arg1, %c0_i32, %c0_i32_0 : i32, i32, i32
  }
  func.func @transform_2(%arg0: i32, %arg1: i32) -> (i32, i32, i32) {
    %c0_i32 = arith.constant 0 : i32
    %c0_i32_0 = arith.constant 0 : i32
    return %arg1, %arg0, %c0_i32 : i32, i32, i32
  }
}

module attributes {stable_mosaic.version = 11 : i64} {
  func.func @_out_proj_kernel(%arg0: i32, %arg1: i32, %arg2: memref<1x8x8xbf16, #tpu.memory_space<vmem>>, %arg3: memref<1x8x32xbf16, #tpu.memory_space<vmem>>, %arg4: memref<1x32xf32, #tpu.memory_space<vmem>>, %arg5: memref<8x32xf32, #tpu.memory_space<vmem>>, %arg6: memref<8x32xf32, #tpu.memory_space<vmem>>) attributes {dimension_semantics = [#tpu.dimension_semantics<parallel>, #tpu.dimension_semantics<arbitrary>], iteration_bounds = array<i64: 2, 4>, scalar_prefetch = 0 : i64, scratch_operands = 1 : i64, tpu.core_type = #tpu.core_type<tc>, window_params = [{transform_indices = @transform_0, window_bounds = array<i64: 1, 8, 8>}, {transform_indices = @transform_1, window_bounds = array<i64: 1, 8, 32>}, {pipeline_mode = #tpu.pipeline_mode<synchronous>, transform_indices = @transform_2, window_bounds = array<i64: 1, 32>}, {transform_indices = @transform_3, window_bounds = array<i64: 8, 32>}]} {
    %c0_i32 = arith.constant 0 : i32
    %0 = arith.cmpi eq, %arg1, %c0_i32 : i32
    %1 = arith.extui %0 : i1 to i32
    %c0_i32_0 = arith.constant 0 : i32
    %2 = arith.cmpi ne, %1, %c0_i32_0 : i32
    scf.if %2 {
      %cst_11 = arith.constant 0.000000e+00 : f32
      %14 = vector.broadcast %cst_11 : f32 to vector<8x32xf32>
      %c0_12 = arith.constant 0 : index
      %c0_13 = arith.constant 0 : index
      %15 = vector.load %arg6[%c0_12, %c0_13] : memref<8x32xf32, #tpu.memory_space<vmem>>, vector<8x32xf32>
      tpu.vector_store %arg6[%c0_12, %c0_13], %14 {strides = array<i32>} : memref<8x32xf32, #tpu.memory_space<vmem>>, vector<8x32xf32>,
    } else {
    }
    %c0 = arith.constant 0 : index
    %c0_1 = arith.constant 0 : index
    %3 = vector.load %arg6[%c0, %c0_1] : memref<8x32xf32, #tpu.memory_space<vmem>>, vector<8x32xf32>
    %c0_2 = arith.constant 0 : index
    %c0_3 = arith.constant 0 : index
    %c0_4 = arith.constant 0 : index
    %4 = vector.load %arg2[%c0_2, %c0_3, %c0_4] : memref<1x8x8xbf16, #tpu.memory_space<vmem>>, vector<1x8x8xbf16>
    %5 = vector.shape_cast %4 : vector<1x8x8xbf16> to vector<8x8xbf16>
    %c0_5 = arith.constant 0 : index
    %c0_6 = arith.constant 0 : index
    %c0_7 = arith.constant 0 : index
    %6 = vector.load %arg3[%c0_5, %c0_6, %c0_7] : memref<1x8x32xbf16, #tpu.memory_space<vmem>>, vector<1x8x32xbf16>
    %7 = vector.shape_cast %6 : vector<1x8x32xbf16> to vector<8x32xbf16>
    %cst = arith.constant dense<0.000000e+00> : vector<8x32xf32>
    %8 = tpu.matmul %5, %7, %cst {dimension_numbers = #tpu.dot_dimension_numbers<[1], [0], [0], [1], [0, 0, 1, 1], [], []>} : vector<8x8xbf16>, vector<8x32xbf16>, vector<8x32xf32> -> vector<8x32xf32>
    %9 = arith.addf %3, %8 : vector<8x32xf32>
    %c0_8 = arith.constant 0 : index
    %c0_9 = arith.constant 0 : index
    %10 = vector.load %arg6[%c0_8, %c0_9] : memref<8x32xf32, #tpu.memory_space<vmem>>, vector<8x32xf32>
    tpu.vector_store %arg6[%c0_8, %c0_9], %9 {strides = array<i32>} : memref<8x32xf32, #tpu.memory_space<vmem>>, vector<8x32xf32>,
    %c3_i32 = arith.constant 3 : i32
    %11 = arith.cmpi eq, %arg1, %c3_i32 : i32
    %12 = arith.extui %11 : i1 to i32
    %c0_i32_10 = arith.constant 0 : i32
    %13 = arith.cmpi ne, %12, %c0_i32_10 : i32
    scf.if %13 {
      %c0_11 = arith.constant 0 : index
      %c0_12 = arith.constant 0 : index
      %14 = vector.load %arg6[%c0_11, %c0_12] : memref<8x32xf32, #tpu.memory_space<vmem>>, vector<8x32xf32>
      %c0_13 = arith.constant 0 : index
      %c0_14 = arith.constant 0 : index
      %15 = vector.load %arg4[%c0_13, %c0_14] : memref<1x32xf32, #tpu.memory_space<vmem>>, vector<1x32xf32>
      %16 = vector.broadcast %15 : vector<1x32xf32> to vector<8x32xf32>
      %17 = arith.addf %14, %16 : vector<8x32xf32>
      %c0_15 = arith.constant 0 : index
      %c0_16 = arith.constant 0 : index
      %18 = vector.load %arg5[%c0_15, %c0_16] : memref<8x32xf32, #tpu.memory_space<vmem>>, vector<8x32xf32>
      tpu.vector_store %arg5[%c0_15, %c0_16], %17 {strides = array<i32>} : memref<8x32xf32, #tpu.memory_space<vmem>>, vector<8x32xf32>,
    } else {
    }
    return
  }
  func.func @transform_0(%arg0: i32, %arg1: i32) -> (i32, i32, i32) {
    %c0_i32 = arith.constant 0 : i32
    %c0_i32_0 = arith.constant 0 : i32
    return %arg1, %arg0, %c0_i32 : i32, i32, i32
  }
  func.func @transform_1(%arg0: i32, %arg1: i32) -> (i32, i32, i32) {
    %c0_i32 = arith.constant 0 : i32
    %c0_i32_0 = arith.constant 0 : i32
    %c0_i32_1 = arith.constant 0 : i32
    return %arg1, %c0_i32, %c0_i32_0 : i32, i32, i32
  }
  func.func @transform_2(%arg0: i32, %arg1: i32) -> (i32, i32) {
    %c0_i32 = arith.constant 0 : i32
    %c0_i32_0 = arith.constant 0 : i32
    %c0_i32_1 = arith.constant 0 : i32
    return %c0_i32, %c0_i32_0 : i32, i32
  }
  func.func @transform_3(%arg0: i32, %arg1: i32) -> (i32, i32) {
    %c0_i32 = arith.constant 0 : i32
    %c0_i32_0 = arith.constant 0 : i32
    return %arg0, %c0_i32 : i32, i32
  }
}

</mosaic_0001>

<llo_original>
// kernel: multi_head_attention.4
$region0: #{multi_head_attention.4}
  #allocation0 [shape = 'u32[]', space=smem, size = 0x4, offset = 0x4, fixed_abs, tag = 'smem constant byte address 0x4 - core index']
  #allocation1 [shape = 'u32[144,128]{1,0:T(1,128)}', space=vmem, size = 0x12000, scoped, tag = 'internal scratch']
  #allocation2 [shape = 'f32[8,1]{1,0:T(8,128)}', space=vmem, size = 0x1000, scoped, tag = 'scratch operand']
  #allocation3 [shape = 'f32[8,1]{1,0:T(8,128)}', space=vmem, size = 0x1000, scoped, tag = 'scratch operand']
  #allocation4 [shape = 'f32[8,8]{1,0:T(8,128)}', space=vmem, size = 0x1000, scoped, tag = 'scratch operand']
  %s0 = inlined_call_operand.vmem [shape: bf16[12,16,8], index: 0, kind: input, shape index: {}, may-alias: {0,1,2}]
  %s1 = inlined_call_operand.vmem [shape: bf16[12,16,8], index: 1, kind: input, shape index: {}, may-alias: {0,1,2}]
  %s2 = inlined_call_operand.vmem [shape: bf16[12,16,8], index: 2, kind: input, shape index: {}, may-alias: {0,1,2}]
  %s3 = inlined_call_operand.vmem [shape: bf16[4,16,8], index: 3, kind: output, shape index: {}]
  %s4 = sld [smem:[#allocation0]]
  $region53: #{multi_head_attention.4} parent=0
    _
  %s6 = ssub.s32 1, %s4
  %s7 = scalar_select 0, %s6, %s4
  loop: start=0, step=1, limit=10
  $region2: #{multi_head_attention.4} parent=0 // loop_pre_header
    _
  $region3: #{multi_head_attention.4} parent=0 // loop_header
    %s9 = sphi 0, %s13
    %p10 = scmp.ge.s32.totalorder %s9, 10
    %s16 = sphi 0, %s42
    %s17 = sphi 0, %s38
    %s18 = sphi 0, %s34
    %s19 = sphi 0, %s30
    %s20 = sphi 0, %s16
    %s21 = sphi 0, %s17
    %s22 = sphi 0, %s18
    %s23 = sphi 0, %s19
    %s24 = sphi 0, %s20
    %s25 = sphi 0, %s21
    %s26 = sphi 0, %s22
    %s27 = sphi 0, %s23
    %s49 = sphi 0, %s51
    %s52 = sphi 0, %s49
    %s53 = sphi 0, %s52
    %s69 = sphi 0, %s53
    %s81 = sphi 0, %s83
    %s84 = sphi 0, %s81
    %s85 = sphi 0, %s84
    %s101 = sphi 0, %s85
    %s113 = sphi 0, %s115
    %s116 = sphi 0, %s113
    %s117 = sphi 0, %s116
    %s133 = sphi 0, %s117
    %s143 = sphi 0, %s145
    %s146 = sphi 0, %s143
    %s147 = sphi 0, %s146
    %s163 = sphi 0, %s147
  $region4: #{multi_head_attention.4} parent=0 // loop_header_branch
    %12 = sbr.rel (%p10) target = $region8
  $region5: #{multi_head_attention.4} parent=0 // loop_body
    %s14 = ssub.s32 %s9, 1
    %s15 = ssub.s32 %s9, 2
    %s28 = sadd.s32 1, %s19
    %p29 = scmp.ge.s32.totalorder %s28, 1
    %s30 = scalar_select %p29, 0, %s28
    %s31 = sadd.s32 1, %s18
    %s32 = scalar_select %p29, %s31, %s18
    %p33 = scmp.ge.s32.totalorder %s32, 1
    %s34 = scalar_select %p33, 0, %s32
    %s35 = sadd.s32 1, %s17
    %s36 = scalar_select %p33, %s35, %s17
    %p37 = scmp.ge.s32.totalorder %s36, 4
    %s38 = scalar_select %p37, 0, %s36
    %s39 = sadd.s32 1, %s16
    %s40 = scalar_select %p37, %s39, %s16
    %p41 = scmp.ge.s32.totalorder %s40, 2
    %s42 = scalar_select %p41, 0, %s40
    %s43 = sadd.s32 %s16, %s18
    %s44 = sadd.s32 %s42, %s34
    %s45 = ssub.s32 %s17, %s38
    %s46 = ssub.s32 %s43, %s44
    %s47 = sor.u32 %s45, %s46
    %p48 = scmp.eq.s32.totalorder %s47, 0
    %s50 = sadd.s32 %s49, 1
    %s51 = scalar_select %p48, %s49, %s50
    %p54 = pneg %p48
    %p55 = scmp.eq.s32.totalorder %s9, 7
    %p56 = por %p54, %p55
    %p57 = scmp.ne.s32.totalorder %s49, %s52
    %p58 = scmp.eq.s32.totalorder %s9, 0
    %p59 = por %p57, %p58
    %p60 = scmp.ne.s32.totalorder %s49, %s52
    %p61 = scmp.eq.s32.totalorder %s14, 7
    %p62 = por %p60, %p61
    %p63 = scmp.ne.s32.totalorder %s52, %s53
    %p64 = scmp.eq.s32.totalorder %s14, 0
    %p65 = por %p63, %p64
    %p66 = scmp.ne.s32.totalorder %s52, %s53
    %p67 = scmp.eq.s32.totalorder %s15, 7
    %p68 = por %p66, %p67
    %p70 = scmp.ne.s32.totalorder %s53, %s69
    %p71 = scmp.eq.s32.totalorder %s15, 0
    %p72 = por %p70, %p71
    %s73 = sadd.s32 %s17, 4
    %s74 = sadd.s32 %s16, %s19
    %s75 = sadd.s32 %s38, 4
    %s76 = sadd.s32 %s42, %s30
    %s77 = ssub.s32 %s73, %s75
    %s78 = ssub.s32 %s74, %s76
    %s79 = sor.u32 %s77, %s78
    %p80 = scmp.eq.s32.totalorder %s79, 0
    %s82 = sadd.s32 %s81, 1
    %s83 = scalar_select %p80, %s81, %s82
    %p86 = pneg %p80
    %p87 = scmp.eq.s32.totalorder %s9, 7
    %p88 = por %p86, %p87
    %p89 = scmp.ne.s32.totalorder %s81, %s84
    %p90 = scmp.eq.s32.totalorder %s9, 0
    %p91 = por %p89, %p90
    %p92 = scmp.ne.s32.totalorder %s81, %s84
    %p93 = scmp.eq.s32.totalorder %s14, 7
    %p94 = por %p92, %p93
    %p95 = scmp.ne.s32.totalorder %s84, %s85
    %p96 = scmp.eq.s32.totalorder %s14, 0
    %p97 = por %p95, %p96
    %p98 = scmp.ne.s32.totalorder %s84, %s85
    %p99 = scmp.eq.s32.totalorder %s15, 7
    %p100 = por %p98, %p99
    %p102 = scmp.ne.s32.totalorder %s85, %s101
    %p103 = scmp.eq.s32.totalorder %s15, 0
    %p104 = por %p102, %p103
    %s105 = sadd.s32 %s17, 8
    %s106 = sadd.s32 %s16, %s19
    %s107 = sadd.s32 %s38, 8
    %s108 = sadd.s32 %s42, %s30
    %s109 = ssub.s32 %s105, %s107
    %s110 = ssub.s32 %s106, %s108
    %s111 = sor.u32 %s109, %s110
    %p112 = scmp.eq.s32.totalorder %s111, 0
    %s114 = sadd.s32 %s113, 1
    %s115 = scalar_select %p112, %s113, %s114
    %p118 = pneg %p112
    %p119 = scmp.eq.s32.totalorder %s9, 7
    %p120 = por %p118, %p119
    %p121 = scmp.ne.s32.totalorder %s113, %s116
    %p122 = scmp.eq.s32.totalorder %s9, 0
    %p123 = por %p121, %p122
    %p124 = scmp.ne.s32.totalorder %s113, %s116
    %p125 = scmp.eq.s32.totalorder %s14, 7
    %p126 = por %p124, %p125
    %p127 = scmp.ne.s32.totalorder %s116, %s117
    %p128 = scmp.eq.s32.totalorder %s14, 0
    %p129 = por %p127, %p128
    %p130 = scmp.ne.s32.totalorder %s116, %s117
    %p131 = scmp.eq.s32.totalorder %s15, 7
    %p132 = por %p130, %p131
    %p134 = scmp.ne.s32.totalorder %s117, %s133
    %p135 = scmp.eq.s32.totalorder %s15, 0
    %p136 = por %p134, %p135
    %s137 = sadd.s32 %s16, %s18
    %s138 = sadd.s32 %s42, %s34
    %s139 = ssub.s32 %s17, %s38
    %s140 = ssub.s32 %s137, %s138
    %s141 = sor.u32 %s139, %s140
    %p142 = scmp.eq.s32.totalorder %s141, 0
    %s144 = sadd.s32 %s143, 1
    %s145 = scalar_select %p142, %s143, %s144
    %p148 = pneg %p142
    %p149 = scmp.eq.s32.totalorder %s9, 7
    %p150 = por %p148, %p149
    %p151 = scmp.ne.s32.totalorder %s143, %s146
    %p152 = scmp.eq.s32.totalorder %s9, 0
    %p153 = por %p151, %p152
    %p154 = scmp.ne.s32.totalorder %s143, %s146
    %p155 = scmp.eq.s32.totalorder %s14, 7
    %p156 = por %p154, %p155
    %p157 = scmp.ne.s32.totalorder %s146, %s147
    %p158 = scmp.eq.s32.totalorder %s14, 0
    %p159 = por %p157, %p158
    %p160 = scmp.ne.s32.totalorder %s146, %s147
    %p161 = scmp.eq.s32.totalorder %s15, 7
    %p162 = por %p160, %p161
    %p164 = scmp.ne.s32.totalorder %s147, %s163
    %p165 = scmp.eq.s32.totalorder %s15, 0
    %p166 = por %p164, %p165
    %p167 = scmp.le.s32.totalorder 1, %s9
    %p168 = scmp.lt.s32.totalorder %s9, 9
    %p169 = pnand %p167, %p168
    %p170 = pneg %p169
    // Predicated region
    $region9: #{multi_head_attention.4} parent=5 // pred_check
      _
    $region10: #{multi_head_attention.4} parent=5 // pred_check_branch
      %172 = sbr.rel (%p169) target = $region12
    $region11: #{multi_head_attention.4} parent=5 // pred_region
      %s173 = ssub.s32 %s9, 1
    $region12: #{multi_head_attention.4} parent=5 // pred_fallthru
      _
    %p174 = scmp.lt.s32.totalorder %s9, 8
    // Predicated region
    $region13: #{multi_head_attention.4} parent=5 // pred_check
      %p175 = pneg %p174
    $region14: #{multi_head_attention.4} parent=5 // pred_check_branch
      %177 = sbr.rel (%p175) target = $region16
    $region15: #{multi_head_attention.4} parent=5 // pred_region
      // Predicated region
      $region17: #{multi_head_attention.4} parent=15 // pred_check
        %p178 = pneg %p59
      $region18: #{multi_head_attention.4} parent=15 // pred_check_branch
        %180 = sbr.rel (%p178) target = $region20
      $region19: #{multi_head_attention.4} parent=15 // pred_region
        %s181 = sadd.s32 %s16, %s18
        %p182 = scmp.lt.s32.totalorder %s17, 11
        %s183 = scalar_select %p182, %s17, 11
        %p184 = scmp.lt.s32.totalorder %s181, 1
        %s185 = scalar_select %p184, %s181, 1
        %s186 = smul.addr %s183, 2
        %s187 = sadd.s32 %s185, %s186
        %s188 = smul.addr %s187, 4
        %s189 = scalar_lea.vmem %s0, %s188
        %s190 = sadd.s32 %s16, %s18
      $region20: #{multi_head_attention.4} parent=15 // pred_fallthru
        _
      // Predicated region
      $region21: #{multi_head_attention.4} parent=15 // pred_check
        %p191 = pneg %p91
      $region22: #{multi_head_attention.4} parent=15 // pred_check_branch
        %193 = sbr.rel (%p191) target = $region24
      $region23: #{multi_head_attention.4} parent=15 // pred_region
        %s194 = sadd.s32 %s17, 4
        %s195 = sadd.s32 %s16, %s19
        %p196 = scmp.lt.s32.totalorder %s194, 11
        %s197 = scalar_select %p196, %s194, 11
        %p198 = scmp.lt.s32.totalorder %s195, 1
        %s199 = scalar_select %p198, %s195, 1
        %s200 = smul.addr %s197, 2
        %s201 = sadd.s32 %s199, %s200
        %s202 = smul.addr %s201, 4
        %s203 = scalar_lea.vmem %s1, %s202
        %s204 = sadd.s32 %s17, 4
        %s205 = sadd.s32 %s16, %s19
      $region24: #{multi_head_attention.4} parent=15 // pred_fallthru
        _
      // Predicated region
      $region25: #{multi_head_attention.4} parent=15 // pred_check
        %p206 = pneg %p123
      $region26: #{multi_head_attention.4} parent=15 // pred_check_branch
        %208 = sbr.rel (%p206) target = $region28
      $region27: #{multi_head_attention.4} parent=15 // pred_region
        %s209 = sadd.s32 %s17, 8
        %s210 = sadd.s32 %s16, %s19
        %p211 = scmp.lt.s32.totalorder %s209, 11
        %s212 = scalar_select %p211, %s209, 11
        %p213 = scmp.lt.s32.totalorder %s210, 1
        %s214 = scalar_select %p213, %s210, 1
        %s215 = smul.addr %s212, 2
        %s216 = sadd.s32 %s214, %s215
        %s217 = smul.addr %s216, 4
        %s218 = scalar_lea.vmem %s2, %s217
        %s219 = sadd.s32 %s17, 8
        %s220 = sadd.s32 %s16, %s19
      $region28: #{multi_head_attention.4} parent=15 // pred_fallthru
        _
    $region16: #{multi_head_attention.4} parent=5 // pred_fallthru
      _
    %p221 = scmp.le.s32.totalorder 1, %s9
    %p222 = scmp.lt.s32.totalorder %s9, 9
    %p223 = pnand %p221, %p222
    %p224 = pneg %p223
    // Predicated region
    $region29: #{multi_head_attention.4} parent=5 // pred_check
      _
    $region30: #{multi_head_attention.4} parent=5 // pred_check_branch
      %226 = sbr.rel (%p223) target = $region32
    $region31: #{multi_head_attention.4} parent=5 // pred_region
      %s227 = ssub.s32 %s9, 1
      %s228 = sadd.s32 %s20, %s22
      %p229 = scmp.lt.s32.totalorder %s21, 11
      %s230 = scalar_select %p229, %s21, 11
      %p231 = scmp.lt.s32.totalorder %s228, 1
      %s232 = scalar_select %p231, %s228, 1
      %s233 = smul.addr %s230, 2
      %s234 = sadd.s32 %s232, %s233
      %s235 = smul.addr %s234, 4
      %s236 = scalar_lea.vmem %s0, %s235
      %p237 = pneg %p65
      %p238 = pneg %p62
      %s239 = sadd.s32 %s21, 4
      %s240 = sadd.s32 %s20, %s23
      %p241 = scmp.lt.s32.totalorder %s239, 11
      %s242 = scalar_select %p241, %s239, 11
      %p243 = scmp.lt.s32.totalorder %s240, 1
      %s244 = scalar_select %p243, %s240, 1
      %s245 = smul.addr %s242, 2
      %s246 = sadd.s32 %s244, %s245
      %s247 = smul.addr %s246, 4
      %s248 = scalar_lea.vmem %s1, %s247
      %p249 = pneg %p97
      %p250 = pneg %p94
      %s251 = sadd.s32 %s21, 8
      %s252 = sadd.s32 %s20, %s23
      %p253 = scmp.lt.s32.totalorder %s251, 11
      %s254 = scalar_select %p253, %s251, 11
      %p255 = scmp.lt.s32.totalorder %s252, 1
      %s256 = scalar_select %p255, %s252, 1
      %s257 = smul.addr %s254, 2
      %s258 = sadd.s32 %s256, %s257
      %s259 = smul.addr %s258, 4
      %s260 = scalar_lea.vmem %s2, %s259
      %p261 = pneg %p129
      %p262 = pneg %p126
      %p263 = pneg %p159
      %p264 = pneg %p156
      %s265 = sadd.s32 %s20, %s22
      %p266 = scmp.lt.s32.totalorder %s21, 3
      %s267 = scalar_select %p266, %s21, 3
      %p268 = scmp.lt.s32.totalorder %s265, 1
      %s269 = scalar_select %p268, %s265, 1
      %s270 = smul.addr %s267, 2
      %s271 = sadd.s32 %s269, %s270
      %s272 = smul.addr %s271, 4
      %s273 = scalar_lea.vmem %s3, %s272
      %s274 = sadd.s32 %s20, %s22
      %p275 = scmp.lt.s32.totalorder %s21, 11
      %s276 = scalar_select %p275, %s21, 11
      %p277 = scmp.lt.s32.totalorder %s274, 1
      %s278 = scalar_select %p277, %s274, 1
      %s279 = smul.addr %s276, 2
      %s280 = sadd.s32 %s278, %s279
      %s281 = smul.addr %s280, 4
      %s282 = scalar_lea.vmem %s0, %s281
      %s283 = sadd.s32 %s20, %s22
      %s284 = sadd.s32 %s21, 4
      %s285 = sadd.s32 %s20, %s23
      %p286 = scmp.lt.s32.totalorder %s284, 11
      %s287 = scalar_select %p286, %s284, 11
      %p288 = scmp.lt.s32.totalorder %s285, 1
      %s289 = scalar_select %p288, %s285, 1
      %s290 = smul.addr %s287, 2
      %s291 = sadd.s32 %s289, %s290
      %s292 = smul.addr %s291, 4
      %s293 = scalar_lea.vmem %s1, %s292
      %s294 = sadd.s32 %s21, 4
      %s295 = sadd.s32 %s20, %s23
      %s296 = sadd.s32 %s21, 8
      %s297 = sadd.s32 %s20, %s23
      %p298 = scmp.lt.s32.totalorder %s296, 11
      %s299 = scalar_select %p298, %s296, 11
      %p300 = scmp.lt.s32.totalorder %s297, 1
      %s301 = scalar_select %p300, %s297, 1
      %s302 = smul.addr %s299, 2
      %s303 = sadd.s32 %s301, %s302
      %s304 = smul.addr %s303, 4
      %s305 = scalar_lea.vmem %s2, %s304
      %s306 = sadd.s32 %s21, 8
      %s307 = sadd.s32 %s20, %s23
      %s308 = sadd.s32 %s20, %s22
      %p309 = scmp.lt.s32.totalorder %s21, 3
      %s310 = scalar_select %p309, %s21, 3
      %p311 = scmp.lt.s32.totalorder %s308, 1
      %s312 = scalar_select %p311, %s308, 1
      %s313 = smul.addr %s310, 2
      %s314 = sadd.s32 %s312, %s313
      %s315 = smul.addr %s314, 4
      %s316 = scalar_lea.vmem %s3, %s315
      %s317 = sadd.s32 %s20, %s22
      %p319 = scmp.eq.s32.totalorder %s23, 0
      // Predicated region
      $region33: #{multi_head_attention.4} parent=31 // pred_check
        %p320 = pneg %p319
      $region34: #{multi_head_attention.4} parent=31 // pred_check_branch
        %322 = sbr.rel (%p320) target = $region36
      $region35: #{multi_head_attention.4} parent=31 // pred_region
        %vm323 = vcmask 7168
        %324 = vst.msk [vmem:[#allocation2] sm:$0xff] %vm323, -1e+30
        %325 = vst.msk [vmem:[#allocation3] sm:$0xff] %vm323, 0.0
        %vm326 = vcmask 64512
        %327 = vst.msk [vmem:[#allocation4] sm:$0xff] %vm326, 0.0
      $region36: #{multi_head_attention.4} parent=31 // pred_fallthru
        _
      %v328 = vld [vmem:[%s282] sm:$0xf]
      %v329 = vld [vmem:[%s293] sm:$0xf]
      %v330 = vld [vmem:[%s305] sm:$0xf]
      %vm331 = vcmask 64512
      %v333 = vsel %vm331, %v328, 0
      %v336 = vsel %vm331, %v329, 0
      %338 = vmatprep.subr.bf16.mxu0 0
      %339 = vmatpush1.bf16.xpose.msra.mxu0 %v336
      %340 = vmatprep.subr.bf16.mxu0 0
      %341 = vmatpush1.bf16.xpose.msra.mxu0 0
      %342 = vmatprep.subr.bf16.mxu0 0
      %343 = vmatpush1.bf16.xpose.msra.mxu0 0
      %344 = vmatprep.subr.bf16.mxu0 0
      %345 = vmatpush1.bf16.xpose.msra.mxu0 0
      %346 = vmatprep.subr.bf16.mxu0 0
      %347 = vmatpush1.bf16.xpose.msra.mxu0 0
      %348 = vmatprep.subr.bf16.mxu0 0
      %349 = vmatpush1.bf16.xpose.msra.mxu0 0
      %350 = vmatprep.subr.bf16.mxu0 0
      %351 = vmatpush1.bf16.xpose.msra.mxu0 0
      %352 = vmatprep.subr.bf16.mxu0 0
      %353 = vmatpush1.bf16.xpose.msra.mxu0 0
      %354 = vmatprep.subr.bf16.mxu0 0
      %355 = vmatpush1.bf16.xpose.msra.mxu0 0
      %356 = vmatprep.subr.bf16.mxu0 0
      %357 = vmatpush1.bf16.xpose.msra.mxu0 0
      %358 = vmatprep.subr.bf16.mxu0 0
      %359 = vmatpush1.bf16.xpose.msra.mxu0 0
      %360 = vmatprep.subr.bf16.mxu0 0
      %361 = vmatpush1.bf16.xpose.msra.mxu0 0
      %362 = vmatprep.subr.bf16.mxu0 0
      %363 = vmatpush1.bf16.xpose.msra.mxu0 0
      %364 = vmatprep.subr.bf16.mxu0 0
      %365 = vmatpush1.bf16.xpose.msra.mxu0 0
      %366 = vmatprep.subr.bf16.mxu0 0
      %367 = vmatpush1.bf16.xpose.msra.mxu0 0
      %368 = vmatprep.subr.bf16.mxu0 0
      %369 = vmatpush1.bf16.xpose.msra.mxu0 0
      %370 = vmatprep.mubr.bf16.mxu0 0
      %371 = vmatmul.mubr.bf16.gmra.mrb[0].mxu0 %v333
      %v372 = vpop.f32.mrb[0].mxu0
      %v373 = vadd.f32 0.0, %v372
      %v374 = vpop.f32.mrb[0].mxu0
      %v375 = vpop.f32.mrb[0].mxu0
      %v376 = vpop.f32.mrb[0].mxu0
      %377 = vdwg.mxu0
      %v378 = vld [vmem:[#allocation2] sm:$0xff]
      %v379 = vsel %vm331, %v373, -inf
      %380 = vmax.xlane.f32.xlu0 %v379
      %v381 = vpop.xlane.xlu0 %380
      %v382 = vmax.f32 %v378, %v381
      %v383 = vsub.f32 %v378, %v382
      %v384 = vmul.f32 %v383, 1.442695
      %v385 = vpow.pop %v384
      %387 = vset.pattern.permute.xlu0 0
      %388 = vperm.xlu0 %387, %v382
      %v389 = vpop.permute.xlu0 %388
      %v391 = vsub.f32 %v373, %v389
      %v392 = vmul.f32 %v391, 1.442695
      %v393 = vpow.pop %v392
      %v394 = vld [vmem:[#allocation3] sm:$0xff]
      %v395 = vmul.f32 %v385, %v394
      %v396 = vsel %vm331, %v393, 0.0
      %397 = vadd.xlane.f32.xlu0 %v396
      %v398 = vpop.xlane.xlu0 %397
      %v399 = vadd.f32 %v395, %v398
      %vm400 = vcmask 7168
      %401 = vst.msk [vmem:[#allocation3] sm:$0xff] %vm400, %v399
      %v402 = vld [vmem:[#allocation4] sm:$0xff]
      %404 = vset.pattern.permute.xlu0 0
      %405 = vperm.xlu0 %404, %v385
      %v406 = vpop.permute.xlu0 %405
      %v408 = vmul.f32 %v406, %v402
      %v409 = vpack.c.bf16 %v393, %v393
      %v411 = vsel %vm331, %v409, 0
      %vm413 = vcmask 1043456
      %v415 = vsel %vm413, %v330, 0
      %417 = vmatprep.subr.bf16.mxu0 0
      %418 = vmatpush1.bf16.msra.mxu0 %v415
      %419 = vmatprep.subr.bf16.mxu0 0
      %420 = vmatpush1.bf16.msra.mxu0 0
      %421 = vmatprep.subr.bf16.mxu0 0
      %422 = vmatpush1.bf16.msra.mxu0 0
      %423 = vmatprep.subr.bf16.mxu0 0
      %424 = vmatpush1.bf16.msra.mxu0 0
      %425 = vmatprep.subr.bf16.mxu0 0
      %426 = vmatpush1.bf16.msra.mxu0 0
      %427 = vmatprep.subr.bf16.mxu0 0
      %428 = vmatpush1.bf16.msra.mxu0 0
      %429 = vmatprep.subr.bf16.mxu0 0
      %430 = vmatpush1.bf16.msra.mxu0 0
      %431 = vmatprep.subr.bf16.mxu0 0
      %432 = vmatpush1.bf16.msra.mxu0 0
      %433 = vmatprep.subr.bf16.mxu0 0
      %434 = vmatpush1.bf16.msra.mxu0 0
      %435 = vmatprep.subr.bf16.mxu0 0
      %436 = vmatpush1.bf16.msra.mxu0 0
      %437 = vmatprep.subr.bf16.mxu0 0
      %438 = vmatpush1.bf16.msra.mxu0 0
      %439 = vmatprep.subr.bf16.mxu0 0
      %440 = vmatpush1.bf16.msra.mxu0 0
      %441 = vmatprep.subr.bf16.mxu0 0
      %442 = vmatpush1.bf16.msra.mxu0 0
      %443 = vmatprep.subr.bf16.mxu0 0
      %444 = vmatpush1.bf16.msra.mxu0 0
      %445 = vmatprep.subr.bf16.mxu0 0
      %446 = vmatpush1.bf16.msra.mxu0 0
      %447 = vmatprep.subr.bf16.mxu0 0
      %448 = vmatpush1.bf16.msra.mxu0 0
      %449 = vmatprep.mubr.bf16.mxu0 0
      %450 = vmatmul.mubr.bf16.gmra.mrb[0].mxu0 %v411
      %v451 = vpop.f32.mrb[0].mxu0
      %v452 = vadd.f32 0.0, %v451
      %v453 = vpop.f32.mrb[0].mxu0
      %v454 = vpop.f32.mrb[0].mxu0
      %v455 = vpop.f32.mrb[0].mxu0
      %456 = vdwg.mxu0
      %v457 = vadd.f32 %v408, %v452
      %458 = vst.msk [vmem:[#allocation4] sm:$0xff] %vm331, %v457
      %459 = vst.msk [vmem:[#allocation2] sm:$0xff] %vm400, %v382
      // Predicated region
      $region37: #{multi_head_attention.4} parent=31 // pred_check
        %p460 = pneg %p319
      $region38: #{multi_head_attention.4} parent=31 // pred_check_branch
        %462 = sbr.rel (%p460) target = $region40
      $region39: #{multi_head_attention.4} parent=31 // pred_region
        %v463 = vld [vmem:[#allocation4] sm:$0xff]
        %v464 = vld [vmem:[#allocation3] sm:$0xff]
        %466 = vset.pattern.permute.xlu0 0
        %467 = vperm.xlu0 %466, %v464
        %v468 = vpop.permute.xlu0 %467
        %v470 = vrcp.pop %v468
        %v471 = vmul.f32 %v463, %v470
        %v472 = vpack.c.bf16 %v471, %v471
        %vm473 = vcmask 60416
        %474 = vst.msk [vmem:[%s316] sm:$0xf] %vm473, %v472
      $region40: #{multi_head_attention.4} parent=31 // pred_fallthru
        _
      %s475 = sadd.s32 %s20, %s22
      %p476 = scmp.lt.s32.totalorder %s21, 3
      %s477 = scalar_select %p476, %s21, 3
      %p478 = scmp.lt.s32.totalorder %s475, 1
      %s479 = scalar_select %p478, %s475, 1
      %s480 = smul.addr %s477, 2
      %s481 = sadd.s32 %s479, %s480
      %s482 = smul.addr %s481, 4
      %s483 = scalar_lea.vmem %s3, %s482
      // Predicated region
      $region41: #{multi_head_attention.4} parent=31 // pred_check
        %p484 = pneg %p156
      $region42: #{multi_head_attention.4} parent=31 // pred_check_branch
        %486 = sbr.rel (%p484) target = $region44
      $region43: #{multi_head_attention.4} parent=31 // pred_region
        %s487 = sadd.s32 %s20, %s22
      $region44: #{multi_head_attention.4} parent=31 // pred_fallthru
        _
    $region32: #{multi_head_attention.4} parent=5 // pred_fallthru
      _
    %p488 = scmp.le.s32.totalorder 2, %s9
    // Predicated region
    $region45: #{multi_head_attention.4} parent=5 // pred_check
      %p489 = pneg %p488
    $region46: #{multi_head_attention.4} parent=5 // pred_check_branch
      %491 = sbr.rel (%p489) target = $region48
    $region47: #{multi_head_attention.4} parent=5 // pred_region
      %s492 = ssub.s32 %s9, 2
      // Predicated region
      $region49: #{multi_head_attention.4} parent=47 // pred_check
        %p493 = pneg %p162
      $region50: #{multi_head_attention.4} parent=47 // pred_check_branch
        %495 = sbr.rel (%p493) target = $region52
      $region51: #{multi_head_attention.4} parent=47 // pred_region
        %s496 = sadd.s32 %s24, %s26
        %p497 = scmp.lt.s32.totalorder %s25, 3
        %s498 = scalar_select %p497, %s25, 3
        %p499 = scmp.lt.s32.totalorder %s496, 1
        %s500 = scalar_select %p499, %s496, 1
        %s501 = smul.addr %s498, 2
        %s502 = sadd.s32 %s500, %s501
        %s503 = smul.addr %s502, 4
        %s504 = scalar_lea.vmem %s3, %s503
      $region52: #{multi_head_attention.4} parent=47 // pred_fallthru
        _
    $region48: #{multi_head_attention.4} parent=5 // pred_fallthru
      _
  $region6: #{multi_head_attention.4} parent=0 // loop_footer
    %s13 = sadd.s32 1, %s9
  $region7: #{multi_head_attention.4} parent=0 // loop_footer_branch
    %8 = sbr.rel target = $region3
  $region8: #{multi_head_attention.4} parent=0 // loop_exit
    _

// kernel: multi_head_attention.3
$region0: #{multi_head_attention.3}
  #allocation0 [shape = 'u32[]', space=smem, size = 0x4, offset = 0x4, fixed_abs, tag = 'smem constant byte address 0x4 - core index']
  #allocation1 [shape = 'u32[144,128]{1,0:T(1,128)}', space=vmem, size = 0x12000, scoped, tag = 'internal scratch']
  %s0 = inlined_call_operand.vmem [shape: bf16[16,32], index: 0, kind: input, shape index: {}]
  %s1 = inlined_call_operand.vmem [shape: bf16[12,32,8], index: 1, kind: input, shape index: {}]
  %s2 = inlined_call_operand.vmem [shape: bf16[12,16,8], index: 2, kind: output, shape index: {}]
  %s3 = sld [smem:[#allocation0]]
  $region41: #{multi_head_attention.3} parent=0
    _
  %s5 = ssub.s32 1, %s3
  %s6 = scalar_select 0, %s5, %s3
  loop: start=0, step=1, limit=26
  $region2: #{multi_head_attention.3} parent=0 // loop_pre_header
    _
  $region3: #{multi_head_attention.3} parent=0 // loop_header
    %s8 = sphi 0, %s12
    %p9 = scmp.ge.s32.totalorder %s8, 26
    %s15 = sphi 0, %s27
    %s16 = sphi 0, %s23
    %s17 = sphi 0, %s15
    %s18 = sphi 0, %s16
    %s19 = sphi 0, %s17
    %s20 = sphi 0, %s18
    %s30 = sphi 0, %s32
    %s33 = sphi 0, %s30
    %s34 = sphi 0, %s33
    %s50 = sphi 0, %s34
    %s56 = sphi 0, %s58
    %s59 = sphi 0, %s56
    %s60 = sphi 0, %s59
    %s76 = sphi 0, %s60
    %s84 = sphi 0, %s86
    %s87 = sphi 0, %s84
    %s88 = sphi 0, %s87
    %s104 = sphi 0, %s88
  $region4: #{multi_head_attention.3} parent=0 // loop_header_branch
    %11 = sbr.rel (%p9) target = $region8
  $region5: #{multi_head_attention.3} parent=0 // loop_body
    %s13 = ssub.s32 %s8, 1
    %s14 = ssub.s32 %s8, 2
    %s21 = sadd.s32 1, %s16
    %p22 = scmp.ge.s32.totalorder %s21, 12
    %s23 = scalar_select %p22, 0, %s21
    %s24 = sadd.s32 1, %s15
    %s25 = scalar_select %p22, %s24, %s15
    %p26 = scmp.ge.s32.totalorder %s25, 2
    %s27 = scalar_select %p26, 0, %s25
    %s28 = ssub.s32 %s15, %s27
    %p29 = scmp.eq.s32.totalorder %s28, 0
    %s31 = sadd.s32 %s30, 1
    %s32 = scalar_select %p29, %s30, %s31
    %p35 = pneg %p29
    %p36 = scmp.eq.s32.totalorder %s8, 23
    %p37 = por %p35, %p36
    %p38 = scmp.ne.s32.totalorder %s30, %s33
    %p39 = scmp.eq.s32.totalorder %s8, 0
    %p40 = por %p38, %p39
    %p41 = scmp.ne.s32.totalorder %s30, %s33
    %p42 = scmp.eq.s32.totalorder %s13, 23
    %p43 = por %p41, %p42
    %p44 = scmp.ne.s32.totalorder %s33, %s34
    %p45 = scmp.eq.s32.totalorder %s13, 0
    %p46 = por %p44, %p45
    %p47 = scmp.ne.s32.totalorder %s33, %s34
    %p48 = scmp.eq.s32.totalorder %s14, 23
    %p49 = por %p47, %p48
    %p51 = scmp.ne.s32.totalorder %s34, %s50
    %p52 = scmp.eq.s32.totalorder %s14, 0
    %p53 = por %p51, %p52
    %s54 = ssub.s32 %s16, %s23
    %p55 = scmp.eq.s32.totalorder %s54, 0
    %s57 = sadd.s32 %s56, 1
    %s58 = scalar_select %p55, %s56, %s57
    %p61 = pneg %p55
    %p62 = scmp.eq.s32.totalorder %s8, 23
    %p63 = por %p61, %p62
    %p64 = scmp.ne.s32.totalorder %s56, %s59
    %p65 = scmp.eq.s32.totalorder %s8, 0
    %p66 = por %p64, %p65
    %p67 = scmp.ne.s32.totalorder %s56, %s59
    %p68 = scmp.eq.s32.totalorder %s13, 23
    %p69 = por %p67, %p68
    %p70 = scmp.ne.s32.totalorder %s59, %s60
    %p71 = scmp.eq.s32.totalorder %s13, 0
    %p72 = por %p70, %p71
    %p73 = scmp.ne.s32.totalorder %s59, %s60
    %p74 = scmp.eq.s32.totalorder %s14, 23
    %p75 = por %p73, %p74
    %p77 = scmp.ne.s32.totalorder %s60, %s76
    %p78 = scmp.eq.s32.totalorder %s14, 0
    %p79 = por %p77, %p78
    %s80 = ssub.s32 %s16, %s23
    %s81 = ssub.s32 %s15, %s27
    %s82 = sor.u32 %s80, %s81
    %p83 = scmp.eq.s32.totalorder %s82, 0
    %s85 = sadd.s32 %s84, 1
    %s86 = scalar_select %p83, %s84, %s85
    %p89 = pneg %p83
    %p90 = scmp.eq.s32.totalorder %s8, 23
    %p91 = por %p89, %p90
    %p92 = scmp.ne.s32.totalorder %s84, %s87
    %p93 = scmp.eq.s32.totalorder %s8, 0
    %p94 = por %p92, %p93
    %p95 = scmp.ne.s32.totalorder %s84, %s87
    %p96 = scmp.eq.s32.totalorder %s13, 23
    %p97 = por %p95, %p96
    %p98 = scmp.ne.s32.totalorder %s87, %s88
    %p99 = scmp.eq.s32.totalorder %s13, 0
    %p100 = por %p98, %p99
    %p101 = scmp.ne.s32.totalorder %s87, %s88
    %p102 = scmp.eq.s32.totalorder %s14, 23
    %p103 = por %p101, %p102
    %p105 = scmp.ne.s32.totalorder %s88, %s104
    %p106 = scmp.eq.s32.totalorder %s14, 0
    %p107 = por %p105, %p106
    %p108 = scmp.le.s32.totalorder 1, %s8
    %p109 = scmp.lt.s32.totalorder %s8, 25
    %p110 = pnand %p108, %p109
    %p111 = pneg %p110
    // Predicated region
    $region9: #{multi_head_attention.3} parent=5 // pred_check
      _
    $region10: #{multi_head_attention.3} parent=5 // pred_check_branch
      %113 = sbr.rel (%p110) target = $region12
    $region11: #{multi_head_attention.3} parent=5 // pred_region
      %s114 = ssub.s32 %s8, 1
    $region12: #{multi_head_attention.3} parent=5 // pred_fallthru
      _
    %p115 = scmp.lt.s32.totalorder %s8, 24
    // Predicated region
    $region13: #{multi_head_attention.3} parent=5 // pred_check
      %p116 = pneg %p115
    $region14: #{multi_head_attention.3} parent=5 // pred_check_branch
      %118 = sbr.rel (%p116) target = $region16
    $region15: #{multi_head_attention.3} parent=5 // pred_region
      // Predicated region
      $region17: #{multi_head_attention.3} parent=15 // pred_check
        %p119 = pneg %p40
      $region18: #{multi_head_attention.3} parent=15 // pred_check_branch
        %121 = sbr.rel (%p119) target = $region20
      $region19: #{multi_head_attention.3} parent=15 // pred_region
        %p122 = scmp.lt.s32.totalorder %s15, 1
        %s123 = scalar_select %p122, %s15, 1
        %s124 = smul.addr %s123, 4
        %s125 = scalar_lea.vmem %s0, %s124
      $region20: #{multi_head_attention.3} parent=15 // pred_fallthru
        _
      // Predicated region
      $region21: #{multi_head_attention.3} parent=15 // pred_check
        %p126 = pneg %p66
      $region22: #{multi_head_attention.3} parent=15 // pred_check_branch
        %128 = sbr.rel (%p126) target = $region24
      $region23: #{multi_head_attention.3} parent=15 // pred_region
        %p129 = scmp.lt.s32.totalorder %s16, 11
        %s130 = scalar_select %p129, %s16, 11
        %s131 = smul.addr %s130, 4
        %s132 = smul.addr %s131, 4
        %s133 = scalar_lea.vmem %s1, %s132
      $region24: #{multi_head_attention.3} parent=15 // pred_fallthru
        _
    $region16: #{multi_head_attention.3} parent=5 // pred_fallthru
      _
    %p134 = scmp.le.s32.totalorder 1, %s8
    %p135 = scmp.lt.s32.totalorder %s8, 25
    %p136 = pnand %p134, %p135
    %p137 = pneg %p136
    // Predicated region
    $region25: #{multi_head_attention.3} parent=5 // pred_check
      _
    $region26: #{multi_head_attention.3} parent=5 // pred_check_branch
      %139 = sbr.rel (%p136) target = $region28
    $region27: #{multi_head_attention.3} parent=5 // pred_region
      %s140 = ssub.s32 %s8, 1
      %p141 = scmp.lt.s32.totalorder %s17, 1
      %s142 = scalar_select %p141, %s17, 1
      %s143 = smul.addr %s142, 4
      %s144 = scalar_lea.vmem %s0, %s143
      %p145 = pneg %p46
      %p146 = pneg %p43
      %p147 = scmp.lt.s32.totalorder %s18, 11
      %s148 = scalar_select %p147, %s18, 11
      %s149 = smul.addr %s148, 4
      %s150 = smul.addr %s149, 4
      %s151 = scalar_lea.vmem %s1, %s150
      %p152 = pneg %p72
      %p153 = pneg %p69
      %p154 = pneg %p100
      %p155 = pneg %p97
      %p156 = scmp.lt.s32.totalorder %s18, 11
      %s157 = scalar_select %p156, %s18, 11
      %p158 = scmp.lt.s32.totalorder %s17, 1
      %s159 = scalar_select %p158, %s17, 1
      %s160 = smul.addr %s157, 2
      %s161 = sadd.s32 %s159, %s160
      %s162 = smul.addr %s161, 4
      %s163 = scalar_lea.vmem %s2, %s162
      %p164 = scmp.lt.s32.totalorder %s17, 1
      %s165 = scalar_select %p164, %s17, 1
      %s166 = smul.addr %s165, 4
      %s167 = scalar_lea.vmem %s0, %s166
      %p168 = scmp.lt.s32.totalorder %s18, 11
      %s169 = scalar_select %p168, %s18, 11
      %s170 = smul.addr %s169, 4
      %s171 = smul.addr %s170, 4
      %s172 = scalar_lea.vmem %s1, %s171
      %p173 = scmp.lt.s32.totalorder %s18, 11
      %s174 = scalar_select %p173, %s18, 11
      %p175 = scmp.lt.s32.totalorder %s17, 1
      %s176 = scalar_select %p175, %s17, 1
      %s177 = smul.addr %s174, 2
      %s178 = sadd.s32 %s176, %s177
      %s179 = smul.addr %s178, 4
      %s180 = scalar_lea.vmem %s2, %s179
      %v182 = vld [vmem:[%s167] sm:$0xf]
      %v183 = vld [vmem:[%s172] sm:$0xf]
      %v184 = vld [vmem:[%s172 + $0x4] sm:$0xf]
      %v185 = vld [vmem:[%s172 + $0x8] sm:$0xf]
      %v186 = vld [vmem:[%s172 + $0xc] sm:$0xf]
      %v191 = vunpack.c.l.b16 %v183
      %v192 = vunpack.c.l.b16 %v184
      %v193 = vunpack.c.l.b16 %v185
      %v194 = vunpack.c.l.b16 %v186
      %v195 = vpack.c.b16 %v192, %v191
      %v196 = vpack.c.b16 %v194, %v193
      %vm199 = vcmask 261120
      %v201 = vsel %vm199, %v182, 0
      %203 = vmatprep.subr.bf16.mxu0 0
      %204 = vmatpush1.bf16.msra.mxu0 %v195
      %205 = vmatprep.subr.bf16.mxu0 0
      %206 = vmatpush1.bf16.msra.mxu0 %v196
      %207 = vmatprep.subr.bf16.mxu0 0
      %208 = vmatpush1.bf16.msra.mxu0 0
      %209 = vmatprep.subr.bf16.mxu0 0
      %210 = vmatpush1.bf16.msra.mxu0 0
      %211 = vmatprep.subr.bf16.mxu0 0
      %212 = vmatpush1.bf16.msra.mxu0 0
      %213 = vmatprep.subr.bf16.mxu0 0
      %214 = vmatpush1.bf16.msra.mxu0 0
      %215 = vmatprep.subr.bf16.mxu0 0
      %216 = vmatpush1.bf16.msra.mxu0 0
      %217 = vmatprep.subr.bf16.mxu0 0
      %218 = vmatpush1.bf16.msra.mxu0 0
      %219 = vmatprep.subr.bf16.mxu0 0
      %220 = vmatpush1.bf16.msra.mxu0 0
      %221 = vmatprep.subr.bf16.mxu0 0
      %222 = vmatpush1.bf16.msra.mxu0 0
      %223 = vmatprep.subr.bf16.mxu0 0
      %224 = vmatpush1.bf16.msra.mxu0 0
      %225 = vmatprep.subr.bf16.mxu0 0
      %226 = vmatpush1.bf16.msra.mxu0 0
      %227 = vmatprep.subr.bf16.mxu0 0
      %228 = vmatpush1.bf16.msra.mxu0 0
      %229 = vmatprep.subr.bf16.mxu0 0
      %230 = vmatpush1.bf16.msra.mxu0 0
      %231 = vmatprep.subr.bf16.mxu0 0
      %232 = vmatpush1.bf16.msra.mxu0 0
      %233 = vmatprep.subr.bf16.mxu0 0
      %234 = vmatpush1.bf16.msra.mxu0 0
      %235 = vmatprep.mubr.bf16.mxu0 0
      %236 = vmatmul.mubr.bf16.gmra.mrb[0].mxu0 %v201
      %v237 = vpop.f32.mrb[0].mxu0
      %v238 = vadd.f32 0.0, %v237
      %v239 = vpop.f32.mrb[0].mxu0
      %v240 = vpop.f32.mrb[0].mxu0
      %v241 = vpop.f32.mrb[0].mxu0
      %242 = vdwg.mxu0
      %v243 = vpack.c.bf16 %v238, %v238
      %vm244 = vcmask 60416
      %245 = vst.msk [vmem:[%s180] sm:$0xf] %vm244, %v243
      %p246 = scmp.lt.s32.totalorder %s18, 11
      %s247 = scalar_select %p246, %s18, 11
      %p248 = scmp.lt.s32.totalorder %s17, 1
      %s249 = scalar_select %p248, %s17, 1
      %s250 = smul.addr %s247, 2
      %s251 = sadd.s32 %s249, %s250
      %s252 = smul.addr %s251, 4
      %s253 = scalar_lea.vmem %s2, %s252
      // Predicated region
      $region29: #{multi_head_attention.3} parent=27 // pred_check
        %p254 = pneg %p97
      $region30: #{multi_head_attention.3} parent=27 // pred_check_branch
        %256 = sbr.rel (%p254) target = $region32
      $region31: #{multi_head_attention.3} parent=27 // pred_region
        _
      $region32: #{multi_head_attention.3} parent=27 // pred_fallthru
        _
    $region28: #{multi_head_attention.3} parent=5 // pred_fallthru
      _
    %p257 = scmp.le.s32.totalorder 2, %s8
    // Predicated region
    $region33: #{multi_head_attention.3} parent=5 // pred_check
      %p258 = pneg %p257
    $region34: #{multi_head_attention.3} parent=5 // pred_check_branch
      %260 = sbr.rel (%p258) target = $region36
    $region35: #{multi_head_attention.3} parent=5 // pred_region
      %s261 = ssub.s32 %s8, 2
      // Predicated region
      $region37: #{multi_head_attention.3} parent=35 // pred_check
        %p262 = pneg %p103
      $region38: #{multi_head_attention.3} parent=35 // pred_check_branch
        %264 = sbr.rel (%p262) target = $region40
      $region39: #{multi_head_attention.3} parent=35 // pred_region
        %p265 = scmp.lt.s32.totalorder %s20, 11
        %s266 = scalar_select %p265, %s20, 11
        %p267 = scmp.lt.s32.totalorder %s19, 1
        %s268 = scalar_select %p267, %s19, 1
        %s269 = smul.addr %s266, 2
        %s270 = sadd.s32 %s268, %s269
        %s271 = smul.addr %s270, 4
        %s272 = scalar_lea.vmem %s2, %s271
      $region40: #{multi_head_attention.3} parent=35 // pred_fallthru
        _
    $region36: #{multi_head_attention.3} parent=5 // pred_fallthru
      _
  $region6: #{multi_head_attention.3} parent=0 // loop_footer
    %s12 = sadd.s32 1, %s8
  $region7: #{multi_head_attention.3} parent=0 // loop_footer_branch
    %7 = sbr.rel target = $region3
  $region8: #{multi_head_attention.3} parent=0 // loop_exit
    _

// kernel: multi_head_attention.5
$region0: #{multi_head_attention.5}
  #allocation0 [shape = 'u32[]', space=smem, size = 0x4, offset = 0x4, fixed_abs, tag = 'smem constant byte address 0x4 - core index']
  #allocation1 [shape = 'u32[144,128]{1,0:T(1,128)}', space=vmem, size = 0x12000, scoped, tag = 'internal scratch']
  #allocation2 [shape = 'f32[8,32]{1,0:T(8,128)}', space=vmem, size = 0x1000, scoped, tag = 'scratch operand']
  %s0 = inlined_call_operand.vmem [shape: bf16[4,16,8], index: 0, kind: input, shape index: {}]
  %s1 = inlined_call_operand.vmem [shape: bf16[4,8,32], index: 1, kind: input, shape index: {}]
  %s2 = inlined_call_operand.vmem [shape: f32[1,32], index: 2, kind: input, shape index: {}]
  %s3 = inlined_call_operand.hbm [shape: f32[16,32], index: 3, kind: output, shape index: {}]
  %s4 = sld [smem:[#allocation0]]
  $region53: #{multi_head_attention.5} parent=0
    _
  %s6 = ssub.s32 1, %s4
  %s7 = scalar_select 0, %s6, %s4
  $region1: #{multi_head_attention.5} parent=0
    #allocation3 [shape = 'u8[8192]{0}', space=vmem, size = 0x2000, scoped, tag = 'output window, operand 0']
    #allocation4 [shape = 's32[2]{0}', space=sflag, size = 0x8, scoped, tag = 'scoped memory for multi_head_attention.5']
    %8 = vsyncpa [#allocation4], 0
    %s9 = scalar_lea.sflag [#allocation4], 1
    %10 = vsyncpa %s9, 0
    loop: start=0, step=1, limit=10
    $region2: #{multi_head_attention.5} parent=1 // loop_pre_header
      _
    $region3: #{multi_head_attention.5} parent=1 // loop_header
      %s12 = sphi 0, %s16
      %p13 = scmp.ge.s32.totalorder %s12, 10
      %s19 = sphi 0, %s31
      %s20 = sphi 0, %s27
      %s21 = sphi 0, %s19
      %s22 = sphi 0, %s20
      %s23 = sphi 0, %s21
      %s24 = sphi 0, %s22
      %s36 = sphi 0, %s38
      %s39 = sphi 0, %s36
      %s40 = sphi 0, %s39
      %s56 = sphi 0, %s40
      %s62 = sphi 0, %s64
      %s65 = sphi 0, %s62
      %s66 = sphi 0, %s65
      %s82 = sphi 0, %s66
      %s86 = sphi 0, %s86
      %s88 = sphi 0, %s86
      %s89 = sphi 0, %s88
      %s103 = sphi 0, %s89
      %s109 = sphi 0, %s111
      %s112 = sphi 0, %s109
      %s113 = sphi 0, %s112
      %s129 = sphi 0, %s113
    $region4: #{multi_head_attention.5} parent=1 // loop_header_branch
      %15 = sbr.rel (%p13) target = $region8
    $region5: #{multi_head_attention.5} parent=1 // loop_body
      %s17 = ssub.s32 %s12, 1
      %s18 = ssub.s32 %s12, 2
      %s25 = sadd.s32 1, %s20
      %p26 = scmp.ge.s32.totalorder %s25, 4
      %s27 = scalar_select %p26, 0, %s25
      %s28 = sadd.s32 1, %s19
      %s29 = scalar_select %p26, %s28, %s19
      %p30 = scmp.ge.s32.totalorder %s29, 2
      %s31 = scalar_select %p30, 0, %s29
      %s32 = ssub.s32 %s20, %s27
      %s33 = ssub.s32 %s19, %s31
      %s34 = sor.u32 %s32, %s33
      %p35 = scmp.eq.s32.totalorder %s34, 0
      %s37 = sadd.s32 %s36, 1
      %s38 = scalar_select %p35, %s36, %s37
      %p41 = pneg %p35
      %p42 = scmp.eq.s32.totalorder %s12, 7
      %p43 = por %p41, %p42
      %p44 = scmp.ne.s32.totalorder %s36, %s39
      %p45 = scmp.eq.s32.totalorder %s12, 0
      %p46 = por %p44, %p45
      %p47 = scmp.ne.s32.totalorder %s36, %s39
      %p48 = scmp.eq.s32.totalorder %s17, 7
      %p49 = por %p47, %p48
      %p50 = scmp.ne.s32.totalorder %s39, %s40
      %p51 = scmp.eq.s32.totalorder %s17, 0
      %p52 = por %p50, %p51
      %p53 = scmp.ne.s32.totalorder %s39, %s40
      %p54 = scmp.eq.s32.totalorder %s18, 7
      %p55 = por %p53, %p54
      %p57 = scmp.ne.s32.totalorder %s40, %s56
      %p58 = scmp.eq.s32.totalorder %s18, 0
      %p59 = por %p57, %p58
      %s60 = ssub.s32 %s20, %s27
      %p61 = scmp.eq.s32.totalorder %s60, 0
      %s63 = sadd.s32 %s62, 1
      %s64 = scalar_select %p61, %s62, %s63
      %p67 = pneg %p61
      %p68 = scmp.eq.s32.totalorder %s12, 7
      %p69 = por %p67, %p68
      %p70 = scmp.ne.s32.totalorder %s62, %s65
      %p71 = scmp.eq.s32.totalorder %s12, 0
      %p72 = por %p70, %p71
      %p73 = scmp.ne.s32.totalorder %s62, %s65
      %p74 = scmp.eq.s32.totalorder %s17, 7
      %p75 = por %p73, %p74
      %p76 = scmp.ne.s32.totalorder %s65, %s66
      %p77 = scmp.eq.s32.totalorder %s17, 0
      %p78 = por %p76, %p77
      %p79 = scmp.ne.s32.totalorder %s65, %s66
      %p80 = scmp.eq.s32.totalorder %s18, 7
      %p81 = por %p79, %p80
      %p83 = scmp.ne.s32.totalorder %s66, %s82
      %p84 = scmp.eq.s32.totalorder %s18, 0
      %p85 = por %p83, %p84
      %s87 = sadd.s32 %s86, 1
      %p90 = scmp.eq.s32.totalorder %s12, 7
      %p91 = scmp.ne.s32.totalorder %s86, %s88
      %p92 = scmp.eq.s32.totalorder %s12, 0
      %p93 = por %p91, %p92
      %p94 = scmp.ne.s32.totalorder %s86, %s88
      %p95 = scmp.eq.s32.totalorder %s17, 7
      %p96 = por %p94, %p95
      %p97 = scmp.ne.s32.totalorder %s88, %s89
      %p98 = scmp.eq.s32.totalorder %s17, 0
      %p99 = por %p97, %p98
      %p100 = scmp.ne.s32.totalorder %s88, %s89
      %p101 = scmp.eq.s32.totalorder %s18, 7
      %p102 = por %p100, %p101
      %p104 = scmp.ne.s32.totalorder %s89, %s103
      %p105 = scmp.eq.s32.totalorder %s18, 0
      %p106 = por %p104, %p105
      %s107 = ssub.s32 %s19, %s31
      %p108 = scmp.eq.s32.totalorder %s107, 0
      %s110 = sadd.s32 %s109, 1
      %s111 = scalar_select %p108, %s109, %s110
      %p114 = pneg %p108
      %p115 = scmp.eq.s32.totalorder %s12, 7
      %p116 = por %p114, %p115
      %p117 = scmp.ne.s32.totalorder %s109, %s112
      %p118 = scmp.eq.s32.totalorder %s12, 0
      %p119 = por %p117, %p118
      %p120 = scmp.ne.s32.totalorder %s109, %s112
      %p121 = scmp.eq.s32.totalorder %s17, 7
      %p122 = por %p120, %p121
      %p123 = scmp.ne.s32.totalorder %s112, %s113
      %p124 = scmp.eq.s32.totalorder %s17, 0
      %p125 = por %p123, %p124
      %p126 = scmp.ne.s32.totalorder %s112, %s113
      %p127 = scmp.eq.s32.totalorder %s18, 7
      %p128 = por %p126, %p127
      %p130 = scmp.ne.s32.totalorder %s113, %s129
      %p131 = scmp.eq.s32.totalorder %s18, 0
      %p132 = por %p130, %p131
      %p133 = scmp.le.s32.totalorder 1, %s12
      %p134 = scmp.lt.s32.totalorder %s12, 9
      %p135 = pnand %p133, %p134
      %p136 = pneg %p135
      // Predicated region
      $region9: #{multi_head_attention.5} parent=5 // pred_check
        _
      $region10: #{multi_head_attention.5} parent=5 // pred_check_branch
        %138 = sbr.rel (%p135) target = $region12
      $region11: #{multi_head_attention.5} parent=5 // pred_region
        %s139 = ssub.s32 %s12, 1
        // Predicated region
        $region13: #{multi_head_attention.5} parent=11 // pred_check
          %p140 = pneg %p99
        $region14: #{multi_head_attention.5} parent=11 // pred_check_branch
          %142 = sbr.rel (%p140) target = $region16
        $region15: #{multi_head_attention.5} parent=11 // pred_region
          _
        $region16: #{multi_head_attention.5} parent=11 // pred_fallthru
          _
      $region12: #{multi_head_attention.5} parent=5 // pred_fallthru
        _
      %p143 = scmp.lt.s32.totalorder %s12, 8
      // Predicated region
      $region17: #{multi_head_attention.5} parent=5 // pred_check
        %p144 = pneg %p143
      $region18: #{multi_head_attention.5} parent=5 // pred_check_branch
        %146 = sbr.rel (%p144) target = $region20
      $region19: #{multi_head_attention.5} parent=5 // pred_region
        // Predicated region
        $region21: #{multi_head_attention.5} parent=19 // pred_check
          %p147 = pneg %p46
        $region22: #{multi_head_attention.5} parent=19 // pred_check_branch
          %149 = sbr.rel (%p147) target = $region24
        $region23: #{multi_head_attention.5} parent=19 // pred_region
          %p150 = scmp.lt.s32.totalorder %s20, 3
          %s151 = scalar_select %p150, %s20, 3
          %p152 = scmp.lt.s32.totalorder %s19, 1
          %s153 = scalar_select %p152, %s19, 1
          %s154 = smul.addr %s151, 2
          %s155 = sadd.s32 %s153, %s154
          %s156 = smul.addr %s155, 4
          %s157 = scalar_lea.vmem %s0, %s156
        $region24: #{multi_head_attention.5} parent=19 // pred_fallthru
          _
        // Predicated region
        $region25: #{multi_head_attention.5} parent=19 // pred_check
          %p158 = pneg %p72
        $region26: #{multi_head_attention.5} parent=19 // pred_check_branch
          %160 = sbr.rel (%p158) target = $region28
        $region27: #{multi_head_attention.5} parent=19 // pred_region
          %p161 = scmp.lt.s32.totalorder %s20, 3
          %s162 = scalar_select %p161, %s20, 3
          %s163 = smul.addr %s162, 4
          %s164 = scalar_lea.vmem %s1, %s163
        $region28: #{multi_head_attention.5} parent=19 // pred_fallthru
          _
      $region20: #{multi_head_attention.5} parent=5 // pred_fallthru
        _
      %p165 = scmp.le.s32.totalorder 1, %s12
      %p166 = scmp.lt.s32.totalorder %s12, 9
      %p167 = pnand %p165, %p166
      %p168 = pneg %p167
      // Predicated region
      $region29: #{multi_head_attention.5} parent=5 // pred_check
        _
      $region30: #{multi_head_attention.5} parent=5 // pred_check_branch
        %170 = sbr.rel (%p167) target = $region32
      $region31: #{multi_head_attention.5} parent=5 // pred_region
        %s171 = ssub.s32 %s12, 1
        %p172 = scmp.lt.s32.totalorder %s22, 3
        %s173 = scalar_select %p172, %s22, 3
        %p174 = scmp.lt.s32.totalorder %s21, 1
        %s175 = scalar_select %p174, %s21, 1
        %s176 = smul.addr %s173, 2
        %s177 = sadd.s32 %s175, %s176
        %s178 = smul.addr %s177, 4
        %s179 = scalar_lea.vmem %s0, %s178
        %p180 = pneg %p52
        %p181 = pneg %p49
        %p182 = scmp.lt.s32.totalorder %s22, 3
        %s183 = scalar_select %p182, %s22, 3
        %s184 = smul.addr %s183, 4
        %s185 = scalar_lea.vmem %s1, %s184
        %p186 = pneg %p78
        %p187 = pneg %p75
        %p188 = pneg %p99
        %p189 = pneg %p96
        %p190 = pneg %p125
        %p191 = pneg %p122
        %s192 = sand.u32 %s112, 1
        %s193 = scalar_lea.sflag [#allocation4], %s192
        %s194 = sand.u32 %s112, 1
        %s195 = smul.addr %s194, 8
        %s196 = scalar_lea.vmem [#allocation3], %s195
        %p197 = scmp.lt.s32.totalorder %s22, 3
        %s198 = scalar_select %p197, %s22, 3
        %p199 = scmp.lt.s32.totalorder %s21, 1
        %s200 = scalar_select %p199, %s21, 1
        %s201 = smul.addr %s198, 2
        %s202 = sadd.s32 %s200, %s201
        %s203 = smul.addr %s202, 4
        %s204 = scalar_lea.vmem %s0, %s203
        %p205 = scmp.lt.s32.totalorder %s22, 3
        %s206 = scalar_select %p205, %s22, 3
        %s207 = smul.addr %s206, 4
        %s208 = scalar_lea.vmem %s1, %s207
        %p210 = scmp.eq.s32.totalorder %s22, 0
        // Predicated region
        $region33: #{multi_head_attention.5} parent=31 // pred_check
          %p211 = pneg %p210
        $region34: #{multi_head_attention.5} parent=31 // pred_check_branch
          %213 = sbr.rel (%p211) target = $region36
        $region35: #{multi_head_attention.5} parent=31 // pred_region
          %vm214 = vcmask 261120
          %215 = vst.msk [vmem:[#allocation2] sm:$0xff] %vm214, 0.0
        $region36: #{multi_head_attention.5} parent=31 // pred_fallthru
          _
        %v216 = vld [vmem:[#allocation2] sm:$0xff]
        %v217 = vld [vmem:[%s204] sm:$0xf]
        %v218 = vld [vmem:[%s208] sm:$0xf]
        %vm219 = vcmask 64512
        %v221 = vsel %vm219, %v217, 0
        %vm223 = vcmask 1043456
        %v225 = vsel %vm223, %v218, 0
        %227 = vmatprep.subr.bf16.mxu0 0
        %228 = vmatpush1.bf16.msra.mxu0 %v225
        %229 = vmatprep.subr.bf16.mxu0 0
        %230 = vmatpush1.bf16.msra.mxu0 0
        %231 = vmatprep.subr.bf16.mxu0 0
        %232 = vmatpush1.bf16.msra.mxu0 0
        %233 = vmatprep.subr.bf16.mxu0 0
        %234 = vmatpush1.bf16.msra.mxu0 0
        %235 = vmatprep.subr.bf16.mxu0 0
        %236 = vmatpush1.bf16.msra.mxu0 0
        %237 = vmatprep.subr.bf16.mxu0 0
        %238 = vmatpush1.bf16.msra.mxu0 0
        %239 = vmatprep.subr.bf16.mxu0 0
        %240 = vmatpush1.bf16.msra.mxu0 0
        %241 = vmatprep.subr.bf16.mxu0 0
        %242 = vmatpush1.bf16.msra.mxu0 0
        %243 = vmatprep.subr.bf16.mxu0 0
        %244 = vmatpush1.bf16.msra.mxu0 0
        %245 = vmatprep.subr.bf16.mxu0 0
        %246 = vmatpush1.bf16.msra.mxu0 0
        %247 = vmatprep.subr.bf16.mxu0 0
        %248 = vmatpush1.bf16.msra.mxu0 0
        %249 = vmatprep.subr.bf16.mxu0 0
        %250 = vmatpush1.bf16.msra.mxu0 0
        %251 = vmatprep.subr.bf16.mxu0 0
        %252 = vmatpush1.bf16.msra.mxu0 0
        %253 = vmatprep.subr.bf16.mxu0 0
        %254 = vmatpush1.bf16.msra.mxu0 0
        %255 = vmatprep.subr.bf16.mxu0 0
        %256 = vmatpush1.bf16.msra.mxu0 0
        %257 = vmatprep.subr.bf16.mxu0 0
        %258 = vmatpush1.bf16.msra.mxu0 0
        %259 = vmatprep.mubr.bf16.mxu0 0
        %260 = vmatmul.mubr.bf16.gmra.mrb[0].mxu0 %v221
        %v261 = vpop.f32.mrb[0].mxu0
        %v262 = vadd.f32 0.0, %v261
        %v263 = vpop.f32.mrb[0].mxu0
        %v264 = vpop.f32.mrb[0].mxu0
        %v265 = vpop.f32.mrb[0].mxu0
        %266 = vdwg.mxu0
        %v267 = vadd.f32 %v216, %v262
        %vm268 = vcmask 261120
        %269 = vst.msk [vmem:[#allocation2] sm:$0xff] %vm268, %v267
        %p270 = scmp.eq.s32.totalorder %s22, 3
        // Predicated region
        $region37: #{multi_head_attention.5} parent=31 // pred_check
          %p271 = pneg %p270
        $region38: #{multi_head_attention.5} parent=31 // pred_check_branch
          %273 = sbr.rel (%p271) target = $region40
        $region39: #{multi_head_attention.5} parent=31 // pred_region
          %v274 = vld [vmem:[#allocation2] sm:$0xff]
          %v275 = vld [vmem:[%s2] sm:$0x1]
          %v277 = vlaneseq
          %v278 = vshrl.u32 %v277, 7
          %v279 = vsub.s32 0, %v278
          %v280 = vrot.slane %v275, %v279
          %v282 = vadd.f32 %v274, %v280
          %283 = vst.msk [vmem:[%s196] sm:$0xff] %vm268, %v282
        $region40: #{multi_head_attention.5} parent=31 // pred_fallthru
          _
        %s284 = sand.u32 %s112, 1
        %s285 = scalar_lea.sflag [#allocation4], %s284
        %s286 = sand.u32 %s112, 1
        %s287 = smul.addr %s286, 8
        %s288 = scalar_lea.vmem [#allocation3], %s287
        // Predicated region
        $region41: #{multi_head_attention.5} parent=31 // pred_check
          %p289 = pneg %p122
        $region42: #{multi_head_attention.5} parent=31 // pred_check_branch
          %291 = sbr.rel (%p289) target = $region44
        $region43: #{multi_head_attention.5} parent=31 // pred_region
          %s293 = ssub.s32 128, 128
          %294 = vsyncadd %s285, %s293
          %s295 = smul.addr %s21, 128
          %s296 = scalar_lea.hbm %s3, %s295
          %s298 = sshll.u32 %s288, 4
          %s299 = int_to_ptr.vmem [resolvable:$true] %s298
          %301 = dma.vmem_to_hbm [thread:$0]  %s299, 128, %s296, %s285
        $region44: #{multi_head_attention.5} parent=31 // pred_fallthru
          _
      $region32: #{multi_head_attention.5} parent=5 // pred_fallthru
        _
      %p302 = scmp.le.s32.totalorder 2, %s12
      // Predicated region
      $region45: #{multi_head_attention.5} parent=5 // pred_check
        %p303 = pneg %p302
      $region46: #{multi_head_attention.5} parent=5 // pred_check_branch
        %305 = sbr.rel (%p303) target = $region48
      $region47: #{multi_head_attention.5} parent=5 // pred_region
        %s306 = ssub.s32 %s12, 2
        // Predicated region
        $region49: #{multi_head_attention.5} parent=47 // pred_check
          %p307 = pneg %p128
        $region50: #{multi_head_attention.5} parent=47 // pred_check_branch
          %309 = sbr.rel (%p307) target = $region52
        $region51: #{multi_head_attention.5} parent=47 // pred_region
          %s310 = sand.u32 %s113, 1
          %s311 = scalar_lea.sflag [#allocation4], %s310
          %s312 = sand.u32 %s113, 1
          %s313 = smul.addr %s312, 8
          %s314 = scalar_lea.vmem [#allocation3], %s313
          %315 = dma.done %s311, 128
        $region52: #{multi_head_attention.5} parent=47 // pred_fallthru
          _
      $region48: #{multi_head_attention.5} parent=5 // pred_fallthru
        _
    $region6: #{multi_head_attention.5} parent=1 // loop_footer
      %s16 = sadd.s32 1, %s12
    $region7: #{multi_head_attention.5} parent=1 // loop_footer_branch
      %11 = sbr.rel target = $region3
    $region8: #{multi_head_attention.5} parent=1 // loop_exit
      _
    %316 = vsyncpa [#allocation4], 1
    %s317 = scalar_lea.sflag [#allocation4], 1
    %318 = vsyncpa %s317, 1

</llo_original>
